<compile_context>
chip_gen: v5e
topology: v5e:2x2
jax: 0.10.0
libtpu: 0.0.40
codegen_flags: <defaults>
</compile_context>

<pallas_src>
import math
import functools

import jax
import jax.numpy as jnp
from jax import lax
from jax.experimental import pallas as pl
from jax.experimental.pallas import tpu as pltpu


# --------------------------------------------------------------------------- #
# Pallas kernel: full stack of EncoderBlocks for one block of Bb batch elements
# --------------------------------------------------------------------------- #
def encoder_stack_kernel(x_ref, bias_ref,
                         wqkv_ref, bqkv_ref,
                         wo_ref, bo_ref,
                         w1_ref, b1_ref, w2_ref, b2_ref,
                         g1_ref, be1_ref,
                         o_ref,
                         act_ref,              # VMEM scratch: resident activations
                         *, num_heads):
    bb, S, D = x_ref.shape
    dh = D // num_heads
    scale = 1.0 / math.sqrt(dh)

    l = pl.program_id(1)
    n_layers = pl.num_programs(1)

    cdt = wqkv_ref.dtype                        # matmul operand dtype (bf16 or f32)

    # layer 0: load embedded+PE'd activations into the layer-resident scratch
    @pl.when(l == 0)
    def _():
        act_ref[...] = x_ref[...].reshape(bb * S, D).astype(jnp.float32)

    x2 = act_ref[...]                           # (Bb*S, D) fp32
    mask_bias = bias_ref[...]                   # (Bb, 1, S) fp32, = mask * (-1e9)

    def mm(a, b):                               # MXU matmul, low-precision in, fp32 acc
        return jnp.dot(a.astype(b.dtype), b, preferred_element_type=jnp.float32)

    # --- multi-head self attention ------------------------------------------
    # fused QKV projection: one (Bb*S, D) x (D, 3D) matmul
    qkv2 = mm(x2, wqkv_ref[0]) + bqkv_ref[0]    # (Bb*S, 3D) fp32
    qkv3 = qkv2.reshape(bb, S, 3 * D)
    wo = wo_ref[0]

    # head loop: output projection (Wo) folded in -> single accumulator, no concat
    acc = jnp.zeros((bb * S, D), jnp.float32)
    for h in range(num_heads):                  # static unroll (num_heads is small)
        qh = qkv3[:, :, h * dh:(h + 1) * dh].astype(cdt)            # (Bb, S, dh)
        kh = qkv3[:, :, D + h * dh:D + (h + 1) * dh].astype(cdt)
        vh = qkv3[:, :, 2 * D + h * dh:2 * D + (h + 1) * dh].astype(cdt)
        # scores without materializing kh.T (batched contraction on last dims)
        s = jnp.einsum('bqd,bkd->bqk', qh, kh,
                       preferred_element_type=jnp.float32) * scale
        s = s + mask_bias                       # (Bb,S,S) + (Bb,1,S)
        m = jnp.max(s, axis=-1, keepdims=True)
        e = jnp.exp(s - m)
        denom = jnp.sum(e, axis=-1, keepdims=True)
        p = e * pl.reciprocal(denom, approx=True)          # softmax (fp32)
        # TODO(synk): attention dropout omitted (eval mode => identity)
        ctx = jnp.einsum('bqk,bkd->bqd', p.astype(cdt), vh,
                         preferred_element_type=jnp.float32)   # (Bb, S, dh)
        acc = acc + mm(ctx.reshape(bb * S, dh),
                       wo[h * dh:(h + 1) * dh, :])              # fold Wo per head
    attn = acc + bo_ref[0]                      # (Bb*S, D)

    # --- layer norm (reference module reuses layer_norm_1 twice) -------------
    gamma = g1_ref[0]                           # (1, D) fp32
    beta = be1_ref[0]

    def layer_norm(y):
        mu = jnp.mean(y, axis=-1, keepdims=True)
        var = jnp.mean(jnp.square(y - mu), axis=-1, keepdims=True)
        return (y - mu) * lax.rsqrt(var + 1e-6) * gamma + beta

    # TODO(synk): dropout_1 / dropout_2 omitted (eval mode => identity)
    y1 = layer_norm(x2 + attn)

    # --- position-wise feed forward ------------------------------------------
    h1 = jnp.maximum(mm(y1, w1_ref[0]) + b1_ref[0], 0.0)
    ffn = mm(h1, w2_ref[0]) + b2_ref[0]

    y2 = layer_norm(y1 + ffn)                   # same layer_norm_1 params as reference
    act_ref[...] = y2                           # carry to next layer (stays in VMEM)

    @pl.when(l == n_layers - 1)
    def _():
        o_ref[...] = y2.reshape(bb, S, D).astype(o_ref.dtype)


def encoder_stack(x, mask, params, num_heads, matmul_dtype=jnp.bfloat16, bb=None):
    """Runs all n_x encoder blocks in a single pallas_call."""
    B, S, D = x.shape
    n_x = params["wq"].shape[0]
    d_ff = params["w1"].shape[-1]

    if bb is None:  # largest divisor of B up to 8 -> more rows per grid step
        bb = max(d for d in range(1, min(B, 8) + 1) if B % d == 0)
    nb = B // bb

    # weights entering the MXU go bf16 (halves DMA bytes / resident VMEM);
    # biases and LN params stay fp32 (elementwise path).
    wdt = matmul_dtype
    wqkv = jnp.concatenate([params["wq"], params["wk"], params["wv"]],
                           axis=-1).astype(wdt)                       # (n_x, D, 3D)
    bqkv = jnp.concatenate([params["bq"], params["bk"], params["bv"]],
                           axis=-1)                                   # (n_x, 1, 3D)
    wo = params["wo"].astype(wdt)
    w1, w2 = params["w1"].astype(wdt), params["w2"].astype(wdt)
    bo, b1, b2 = params["bo"], params["b1"], params["b2"]
    g1, be1 = params["g1"], params["be1"]

    # additive mask bias hoisted out of the kernel (computed once, reused by all
    # layers / heads)
    mask_bias = (mask * (-1e9)).astype(jnp.float32)                   # (B, 1, S)

    kernel = functools.partial(encoder_stack_kernel, num_heads=num_heads)

    def wspec(shape):   # per-layer weight slab, indexed by the layer grid axis
        return pl.BlockSpec((1,) + shape, lambda b, l: (l, 0, 0))

    in_specs = [
        pl.BlockSpec((bb, S, D), lambda b, l: (b, 0, 0)),   # x (per-batch block)
        pl.BlockSpec((bb, 1, S), lambda b, l: (b, 0, 0)),   # mask bias
        wspec((D, 3 * D)), wspec((1, 3 * D)),               # fused Wqkv, bqkv
        wspec((D, D)), wspec((1, D)),                       # Wo, bo
        wspec((D, d_ff)), wspec((1, d_ff)),                 # W1, b1
        wspec((d_ff, D)), wspec((1, D)),                    # W2, b2
        wspec((1, D)), wspec((1, D)),                       # ln gamma, beta
    ]

    # VMEM budget: double-buffered weights + io blocks, resident scratch, headroom
    isz = jnp.dtype(wdt).itemsize
    weight_bytes = (4 * D * D + 2 * D * d_ff) * isz + (7 * D + d_ff) * 4
    io_bytes = (2 * bb * S * D + bb * S) * 4
    work_bytes = bb * S * D * 4 + 8 * bb * S * max(3 * D, d_ff, S) * 4
    est = 2 * (weight_bytes + io_bytes) + work_bytes
    vmem_limit = int(min(max(2 * est, 32 << 20), 100 << 20))

    return pl.pallas_call(
        kernel,
        out_shape=jax.ShapeDtypeStruct((B, S, D), jnp.float32),
        grid_spec=pltpu.PrefetchScalarGridSpec(
            num_scalar_prefetch=0,
            grid=(nb, n_x),                     # layer axis innermost (sequential)
            in_specs=in_specs,
            out_specs=pl.BlockSpec((bb, S, D), lambda b, l: (b, 0, 0)),
            scratch_shapes=[pltpu.VMEM((bb * S, D), jnp.float32)],
        ),
        compiler_params=pltpu.CompilerParams(
            dimension_semantics=("parallel", "arbitrary"),
            vmem_limit_bytes=vmem_limit,
        ),
    )(x, mask_bias, wqkv, bqkv, wo, bo, w1, b1, w2, b2, g1, be1)


# --------------------------------------------------------------------------- #
# Parameter construction + full forward (embedding / PE glue in plain JAX)
# --------------------------------------------------------------------------- #
def make_positional_encoding(max_len, d_model):
    position = jnp.arange(max_len, dtype=jnp.float32)[:, None]
    div_term = jnp.exp(jnp.arange(0, d_model, 2, dtype=jnp.float32)
                       * (-math.log(10000.0) / d_model))
    pe = jnp.zeros((max_len, d_model), jnp.float32)
    pe = pe.at[:, 0::2].set(jnp.sin(position * div_term))
    pe = pe.at[:, 1::2].set(jnp.cos(position * div_term))
    return pe


def init_params(key, n_x, d_model, d_ff, vocab_size, max_len):
    keys = jax.random.split(key, 7)
    params = {
        "lut": jax.random.normal(keys[0], (vocab_size, d_model), jnp.float32) * 0.1,
        "pe": make_positional_encoding(max_len, d_model),
        # per-layer weights stacked with a leading layer axis (for the layer grid)
        "wq": jax.random.normal(keys[1], (n_x, d_model, d_model), jnp.float32) * 0.05,
        "wk": jax.random.normal(keys[2], (n_x, d_model, d_model), jnp.float32) * 0.05,
        "wv": jax.random.normal(keys[3], (n_x, d_model, d_model), jnp.float32) * 0.05,
        "wo": jax.random.normal(keys[4], (n_x, d_model, d_model), jnp.float32) * 0.05,
        "w1": jax.random.normal(keys[5], (n_x, d_model, d_ff), jnp.float32) * 0.05,
        "w2": jax.random.normal(keys[6], (n_x, d_ff, d_model), jnp.float32) * 0.05,
        "bq": jnp.zeros((n_x, 1, d_model), jnp.float32),
        "bk": jnp.zeros((n_x, 1, d_model), jnp.float32),
        "bv": jnp.zeros((n_x, 1, d_model), jnp.float32),
        "bo": jnp.zeros((n_x, 1, d_model), jnp.float32),
        "b1": jnp.zeros((n_x, 1, d_ff), jnp.float32),
        "b2": jnp.zeros((n_x, 1, d_model), jnp.float32),
        "g1": jnp.ones((n_x, 1, d_model), jnp.float32),    # layer_norm_1 weight
        "be1": jnp.zeros((n_x, 1, d_model), jnp.float32),  # layer_norm_1 bias
    }
    return params


def transformer_encoder_forward(tokens, mask, params, num_heads,
                                matmul_dtype=jnp.bfloat16):
    d_model = params["lut"].shape[1]
    x = params["lut"][tokens] * math.sqrt(d_model)          # WordEmbeddings
    x = x + params["pe"][: tokens.shape[1]][None]           # PositionalEncoding
    # TODO(synk): embedding-level dropout omitted (eval mode => identity)
    return encoder_stack(x, mask, params, num_heads, matmul_dtype=matmul_dtype)


# pure-JAX fp32 reference (for the correctness check only)
def _block_ref(x, mask, p, num_heads):
    B, S, D = x.shape
    dh = D // num_heads

    def ln(y):
        mu = y.mean(-1, keepdims=True)
        var = ((y - mu) ** 2).mean(-1, keepdims=True)
        return (y - mu) / jnp.sqrt(var + 1e-6) * p["g1"][0] + p["be1"][0]

    q = x @ p["wq"] + p["bq"][0]
    k = x @ p["wk"] + p["bk"][0]
    v = x @ p["wv"] + p["bv"][0]
    q = q.reshape(B, S, num_heads, dh).transpose(0, 2, 1, 3)
    k = k.reshape(B, S, num_heads, dh).transpose(0, 2, 1, 3)
    v = v.reshape(B, S, num_heads, dh).transpose(0, 2, 1, 3)
    scores = jnp.einsum("bhqd,bhkd->bhqk", q, k) / math.sqrt(dh)
    scores = scores + mask[:, :, None, :] * (-1e9)
    w = jax.nn.softmax(scores, axis=-1)
    a = jnp.einsum("bhqk,bhkd->bhqd", w, v).transpose(0, 2, 1, 3).reshape(B, S, D)
    a = a @ p["wo"] + p["bo"][0]
    y1 = ln(x + a)
    ffn = jnp.maximum(y1 @ p["w1"] + p["b1"][0], 0.0) @ p["w2"] + p["b2"][0]
    return ln(y1 + ffn)


if __name__ == "__main__":
    # small config
    B, S = 2, 8
    d_model, num_heads, d_ff = 32, 4, 64
    vocab_size, max_len, n_x = 50, 64, 2

    key = jax.random.PRNGKey(0)
    k_tok, k_par = jax.random.split(key)
    tokens = jax.random.randint(k_tok, (B, S), 0, vocab_size, dtype=jnp.int32)
    # pad mask: last two positions of batch 1 are masked
    mask = jnp.zeros((B, 1, S), jnp.float32).at[1, 0, -2:].set(1.0)

    params = init_params(k_par, n_x, d_model, d_ff, vocab_size, max_len)

    out = transformer_encoder_forward(tokens, mask, params, num_heads)
    out = jax.block_until_ready(out)

    # fp32 reference check (kernel uses bf16 matmul operands -> loosened tolerance)
    x_ref = params["lut"][tokens] * math.sqrt(d_model) + params["pe"][:S][None]
    names = ("wq", "bq", "wk", "bk", "wv", "bv", "wo", "bo",
             "w1", "b1", "w2", "b2", "g1", "be1")
    for i in range(n_x):
        blk = {k: params[k][i] for k in names}
        x_ref = _block_ref(x_ref, mask, blk, num_heads)

    assert out.shape == (B, S, d_model)
    max_err = float(jnp.max(jnp.abs(out - x_ref)))
    assert jnp.allclose(out, x_ref, atol=2e-2, rtol=2e-2), \
        f"mismatch vs reference (max abs err {max_err})"

    print("KERNEL_OK")
</pallas_src>

<mosaic_0001>
module attributes {stable_mosaic.version = 11 : i64} {
  func.func @encoder_stack_kernel(%arg0: i32, %arg1: i32, %arg2: memref<2x8x32xf32, #tpu.memory_space<vmem>>, %arg3: memref<2x1x8xf32, #tpu.memory_space<vmem>>, %arg4: memref<1x32x96xbf16, #tpu.memory_space<vmem>>, %arg5: memref<1x1x96xf32, #tpu.memory_space<vmem>>, %arg6: memref<1x32x32xbf16, #tpu.memory_space<vmem>>, %arg7: memref<1x1x32xf32, #tpu.memory_space<vmem>>, %arg8: memref<1x32x64xbf16, #tpu.memory_space<vmem>>, %arg9: memref<1x1x64xf32, #tpu.memory_space<vmem>>, %arg10: memref<1x64x32xbf16, #tpu.memory_space<vmem>>, %arg11: memref<1x1x32xf32, #tpu.memory_space<vmem>>, %arg12: memref<1x1x32xf32, #tpu.memory_space<vmem>>, %arg13: memref<1x1x32xf32, #tpu.memory_space<vmem>>, %arg14: memref<2x8x32xf32, #tpu.memory_space<vmem>>, %arg15: memref<16x32xf32, #tpu.memory_space<vmem>>) attributes {dimension_semantics = [#tpu.dimension_semantics<parallel>, #tpu.dimension_semantics<arbitrary>], iteration_bounds = array<i64: 1, 2>, scalar_prefetch = 0 : i64, scratch_operands = 1 : i64, tpu.core_type = #tpu.core_type<tc>, window_params = [{transform_indices = @transform_0, window_bounds = array<i64: 2, 8, 32>}, {transform_indices = @transform_1, window_bounds = array<i64: 2, 1, 8>}, {transform_indices = @transform_2, window_bounds = array<i64: 1, 32, 96>}, {transform_indices = @transform_3, window_bounds = array<i64: 1, 1, 96>}, {transform_indices = @transform_4, window_bounds = array<i64: 1, 32, 32>}, {transform_indices = @transform_5, window_bounds = array<i64: 1, 1, 32>}, {transform_indices = @transform_6, window_bounds = array<i64: 1, 32, 64>}, {transform_indices = @transform_7, window_bounds = array<i64: 1, 1, 64>}, {transform_indices = @transform_8, window_bounds = array<i64: 1, 64, 32>}, {transform_indices = @transform_9, window_bounds = array<i64: 1, 1, 32>}, {transform_indices = @transform_10, window_bounds = array<i64: 1, 1, 32>}, {transform_indices = @transform_11, window_bounds = array<i64: 1, 1, 32>}, {transform_indices = @transform_12, window_bounds = array<i64: 2, 8, 32>}]} {
    %c0_i32 = arith.constant 0 : i32
    %0 = arith.cmpi eq, %arg1, %c0_i32 : i32
    %1 = arith.extui %0 : i1 to i32
    %c0_i32_0 = arith.constant 0 : i32
    %2 = arith.cmpi ne, %1, %c0_i32_0 : i32
    scf.if %2 {
      %c0_76 = arith.constant 0 : index
      %c0_77 = arith.constant 0 : index
      %c0_78 = arith.constant 0 : index
      %205 = vector.load %arg2[%c0_76, %c0_77, %c0_78] : memref<2x8x32xf32, #tpu.memory_space<vmem>>, vector<2x8x32xf32>
      %206 = vector.shape_cast %205 : vector<2x8x32xf32> to vector<16x32xf32>
      %c0_79 = arith.constant 0 : index
      %c0_80 = arith.constant 0 : index
      %207 = vector.load %arg15[%c0_79, %c0_80] : memref<16x32xf32, #tpu.memory_space<vmem>>, vector<16x32xf32>
      tpu.vector_store %arg15[%c0_79, %c0_80], %206 {strides = array<i32>} : memref<16x32xf32, #tpu.memory_space<vmem>>, vector<16x32xf32>,
    } else {
    }
    %c0 = arith.constant 0 : index
    %c0_1 = arith.constant 0 : index
    %3 = vector.load %arg15[%c0, %c0_1] : memref<16x32xf32, #tpu.memory_space<vmem>>, vector<16x32xf32>
    %c0_2 = arith.constant 0 : index
    %c0_3 = arith.constant 0 : index
    %c0_4 = arith.constant 0 : index
    %4 = vector.load %arg3[%c0_2, %c0_3, %c0_4] : memref<2x1x8xf32, #tpu.memory_space<vmem>>, vector<2x1x8xf32>
    %c0_5 = arith.constant 0 : index
    %c0_6 = arith.constant 0 : index
    %c0_7 = arith.constant 0 : index
    %5 = vector.load %arg4[%c0_5, %c0_6, %c0_7] : memref<1x32x96xbf16, #tpu.memory_space<vmem>>, vector<1x32x96xbf16>
    %6 = vector.shape_cast %5 : vector<1x32x96xbf16> to vector<32x96xbf16>
    %7 = arith.truncf %3 : vector<16x32xf32> to vector<16x32xbf16>
    %cst = arith.constant dense<0.000000e+00> : vector<16x96xf32>
    %8 = tpu.matmul %7, %6, %cst {dimension_numbers = #tpu.dot_dimension_numbers<[1], [0], [0], [1], [0, 0, 1, 1], [], []>} : vector<16x32xbf16>, vector<32x96xbf16>, vector<16x96xf32> -> vector<16x96xf32>
    %c0_8 = arith.constant 0 : index
    %c0_9 = arith.constant 0 : index
    %c0_10 = arith.constant 0 : index
    %9 = vector.load %arg5[%c0_8, %c0_9, %c0_10] : memref<1x1x96xf32, #tpu.memory_space<vmem>>, vector<1x1x96xf32>
    %10 = vector.shape_cast %9 : vector<1x1x96xf32> to vector<1x96xf32>
    %11 = vector.broadcast %10 : vector<1x96xf32> to vector<16x96xf32>
    %12 = arith.addf %8, %11 : vector<16x96xf32>
    %13 = vector.shape_cast %12 : vector<16x96xf32> to vector<2x8x96xf32>
    %c0_11 = arith.constant 0 : index
    %c0_12 = arith.constant 0 : index
    %c0_13 = arith.constant 0 : index
    %14 = vector.load %arg6[%c0_11, %c0_12, %c0_13] : memref<1x32x32xbf16, #tpu.memory_space<vmem>>, vector<1x32x32xbf16>
    %15 = vector.shape_cast %14 : vector<1x32x32xbf16> to vector<32x32xbf16>
    %cst_14 = arith.constant 0.000000e+00 : f32
    %16 = vector.broadcast %cst_14 : f32 to vector<16x32xf32>
    %17 = vector.extract_strided_slice %13 {offsets = [0, 0, 0], sizes = [2, 8, 8], strides = [1, 1, 1]} : vector<2x8x96xf32> to vector<2x8x8xf32>
    %18 = arith.truncf %17 : vector<2x8x8xf32> to vector<2x8x8xbf16>
    %19 = vector.extract_strided_slice %13 {offsets = [0, 0, 32], sizes = [2, 8, 8], strides = [1, 1, 1]} : vector<2x8x96xf32> to vector<2x8x8xf32>
    %20 = arith.truncf %19 : vector<2x8x8xf32> to vector<2x8x8xbf16>
    %21 = vector.extract_strided_slice %13 {offsets = [0, 0, 64], sizes = [2, 8, 8], strides = [1, 1, 1]} : vector<2x8x96xf32> to vector<2x8x8xf32>
    %22 = arith.truncf %21 : vector<2x8x8xf32> to vector<2x8x8xbf16>
    "tpu.trace_start"() <{level = 10 : i32, message = "bqd,bkd->bqk"}> : () -> ()
    %cst_15 = arith.constant dense<0.000000e+00> : vector<2x8x8xf32>
    %23 = tpu.matmul %18, %20, %cst_15 {dimension_numbers = #tpu.dot_dimension_numbers<[2], [2], [1], [1], [0, 0, 0, 1, 1, 1], [0], [0]>} : vector<2x8x8xbf16>, vector<2x8x8xbf16>, vector<2x8x8xf32> -> vector<2x8x8xf32>
    "tpu.trace_stop"() : () -> ()
    %cst_16 = arith.constant 0.353553385 : f32
    %24 = vector.broadcast %cst_16 : f32 to vector<2x8x8xf32>
    %25 = arith.mulf %23, %24 : vector<2x8x8xf32>
    %26 = vector.broadcast %4 : vector<2x1x8xf32> to vector<2x8x8xf32>
    %27 = arith.addf %25, %26 : vector<2x8x8xf32>
    %cst_17 = arith.constant dense<0xFF800000> : vector<2x8xf32>
    %28 = vector.multi_reduction <maximumf>, %27, %cst_17 [2] : vector<2x8x8xf32> to vector<2x8xf32>
    %29 = vector.shape_cast %28 : vector<2x8xf32> to vector<2x8x1xf32>
    %30 = vector.broadcast %29 : vector<2x8x1xf32> to vector<2x8x8xf32>
    %31 = arith.subf %27, %30 : vector<2x8x8xf32>
    %32 = math.exp %31 : vector<2x8x8xf32>
    %cst_18 = arith.constant dense<0.000000e+00> : vector<2x8xf32>
    %33 = vector.multi_reduction <add>, %32, %cst_18 [2] : vector<2x8x8xf32> to vector<2x8xf32>
    %34 = vector.shape_cast %33 : vector<2x8xf32> to vector<2x8x1xf32>
    %35 = tpu.reciprocal %34 {approx = true} : vector<2x8x1xf32> -> vector<2x8x1xf32>
    %36 = vector.broadcast %35 : vector<2x8x1xf32> to vector<2x8x8xf32>
    %37 = arith.mulf %32, %36 : vector<2x8x8xf32>
    %38 = arith.truncf %37 : vector<2x8x8xf32> to vector<2x8x8xbf16>
    "tpu.trace_start"() <{level = 10 : i32, message = "bqk,bkd->bqd"}> : () -> ()
    %cst_19 = arith.constant dense<0.000000e+00> : vector<2x8x8xf32>
    %39 = tpu.matmul %38, %22, %cst_19 {dimension_numbers = #tpu.dot_dimension_numbers<[2], [1], [1], [2], [0, 0, 0, 1, 1, 2], [0], [0]>} : vector<2x8x8xbf16>, vector<2x8x8xbf16>, vector<2x8x8xf32> -> vector<2x8x8xf32>
    "tpu.trace_stop"() : () -> ()
    %40 = vector.shape_cast %39 : vector<2x8x8xf32> to vector<16x8xf32>
    %41 = vector.extract_strided_slice %15 {offsets = [0, 0], sizes = [8, 32], strides = [1, 1]} : vector<32x32xbf16> to vector<8x32xbf16>
    %42 = arith.truncf %40 : vector<16x8xf32> to vector<16x8xbf16>
    %cst_20 = arith.constant dense<0.000000e+00> : vector<16x32xf32>
    %43 = tpu.matmul %42, %41, %cst_20 {dimension_numbers = #tpu.dot_dimension_numbers<[1], [0], [0], [1], [0, 0, 1, 1], [], []>} : vector<16x8xbf16>, vector<8x32xbf16>, vector<16x32xf32> -> vector<16x32xf32>
    %44 = arith.addf %16, %43 : vector<16x32xf32>
    %45 = vector.extract_strided_slice %13 {offsets = [0, 0, 8], sizes = [2, 8, 8], strides = [1, 1, 1]} : vector<2x8x96xf32> to vector<2x8x8xf32>
    %46 = arith.truncf %45 : vector<2x8x8xf32> to vector<2x8x8xbf16>
    %47 = vector.extract_strided_slice %13 {offsets = [0, 0, 40], sizes = [2, 8, 8], strides = [1, 1, 1]} : vector<2x8x96xf32> to vector<2x8x8xf32>
    %48 = arith.truncf %47 : vector<2x8x8xf32> to vector<2x8x8xbf16>
    %49 = vector.extract_strided_slice %13 {offsets = [0, 0, 72], sizes = [2, 8, 8], strides = [1, 1, 1]} : vector<2x8x96xf32> to vector<2x8x8xf32>
    %50 = arith.truncf %49 : vector<2x8x8xf32> to vector<2x8x8xbf16>
    "tpu.trace_start"() <{level = 10 : i32, message = "bqd,bkd->bqk"}> : () -> ()
    %cst_21 = arith.constant dense<0.000000e+00> : vector<2x8x8xf32>
    %51 = tpu.matmul %46, %48, %cst_21 {dimension_numbers = #tpu.dot_dimension_numbers<[2], [2], [1], [1], [0, 0, 0, 1, 1, 1], [0], [0]>} : vector<2x8x8xbf16>, vector<2x8x8xbf16>, vector<2x8x8xf32> -> vector<2x8x8xf32>
    "tpu.trace_stop"() : () -> ()
    %cst_22 = arith.constant 0.353553385 : f32
    %52 = vector.broadcast %cst_22 : f32 to vector<2x8x8xf32>
    %53 = arith.mulf %51, %52 : vector<2x8x8xf32>
    %54 = vector.broadcast %4 : vector<2x1x8xf32> to vector<2x8x8xf32>
    %55 = arith.addf %53, %54 : vector<2x8x8xf32>
    %cst_23 = arith.constant dense<0xFF800000> : vector<2x8xf32>
    %56 = vector.multi_reduction <maximumf>, %55, %cst_23 [2] : vector<2x8x8xf32> to vector<2x8xf32>
    %57 = vector.shape_cast %56 : vector<2x8xf32> to vector<2x8x1xf32>
    %58 = vector.broadcast %57 : vector<2x8x1xf32> to vector<2x8x8xf32>
    %59 = arith.subf %55, %58 : vector<2x8x8xf32>
    %60 = math.exp %59 : vector<2x8x8xf32>
    %cst_24 = arith.constant dense<0.000000e+00> : vector<2x8xf32>
    %61 = vector.multi_reduction <add>, %60, %cst_24 [2] : vector<2x8x8xf32> to vector<2x8xf32>
    %62 = vector.shape_cast %61 : vector<2x8xf32> to vector<2x8x1xf32>
    %63 = tpu.reciprocal %62 {approx = true} : vector<2x8x1xf32> -> vector<2x8x1xf32>
    %64 = vector.broadcast %63 : vector<2x8x1xf32> to vector<2x8x8xf32>
    %65 = arith.mulf %60, %64 : vector<2x8x8xf32>
    %66 = arith.truncf %65 : vector<2x8x8xf32> to vector<2x8x8xbf16>
    "tpu.trace_start"() <{level = 10 : i32, message = "bqk,bkd->bqd"}> : () -> ()
    %cst_25 = arith.constant dense<0.000000e+00> : vector<2x8x8xf32>
    %67 = tpu.matmul %66, %50, %cst_25 {dimension_numbers = #tpu.dot_dimension_numbers<[2], [1], [1], [2], [0, 0, 0, 1, 1, 2], [0], [0]>} : vector<2x8x8xbf16>, vector<2x8x8xbf16>, vector<2x8x8xf32> -> vector<2x8x8xf32>
    "tpu.trace_stop"() : () -> ()
    %68 = vector.shape_cast %67 : vector<2x8x8xf32> to vector<16x8xf32>
    %69 = vector.extract_strided_slice %15 {offsets = [8, 0], sizes = [8, 32], strides = [1, 1]} : vector<32x32xbf16> to vector<8x32xbf16>
    %70 = arith.truncf %68 : vector<16x8xf32> to vector<16x8xbf16>
    %cst_26 = arith.constant dense<0.000000e+00> : vector<16x32xf32>
    %71 = tpu.matmul %70, %69, %cst_26 {dimension_numbers = #tpu.dot_dimension_numbers<[1], [0], [0], [1], [0, 0, 1, 1], [], []>} : vector<16x8xbf16>, vector<8x32xbf16>, vector<16x32xf32> -> vector<16x32xf32>
    %72 = arith.addf %44, %71 : vector<16x32xf32>
    %73 = vector.extract_strided_slice %13 {offsets = [0, 0, 16], sizes = [2, 8, 8], strides = [1, 1, 1]} : vector<2x8x96xf32> to vector<2x8x8xf32>
    %74 = arith.truncf %73 : vector<2x8x8xf32> to vector<2x8x8xbf16>
    %75 = vector.extract_strided_slice %13 {offsets = [0, 0, 48], sizes = [2, 8, 8], strides = [1, 1, 1]} : vector<2x8x96xf32> to vector<2x8x8xf32>
    %76 = arith.truncf %75 : vector<2x8x8xf32> to vector<2x8x8xbf16>
    %77 = vector.extract_strided_slice %13 {offsets = [0, 0, 80], sizes = [2, 8, 8], strides = [1, 1, 1]} : vector<2x8x96xf32> to vector<2x8x8xf32>
    %78 = arith.truncf %77 : vector<2x8x8xf32> to vector<2x8x8xbf16>
    "tpu.trace_start"() <{level = 10 : i32, message = "bqd,bkd->bqk"}> : () -> ()
    %cst_27 = arith.constant dense<0.000000e+00> : vector<2x8x8xf32>
    %79 = tpu.matmul %74, %76, %cst_27 {dimension_numbers = #tpu.dot_dimension_numbers<[2], [2], [1], [1], [0, 0, 0, 1, 1, 1], [0], [0]>} : vector<2x8x8xbf16>, vector<2x8x8xbf16>, vector<2x8x8xf32> -> vector<2x8x8xf32>
    "tpu.trace_stop"() : () -> ()
    %cst_28 = arith.constant 0.353553385 : f32
    %80 = vector.broadcast %cst_28 : f32 to vector<2x8x8xf32>
    %81 = arith.mulf %79, %80 : vector<2x8x8xf32>
    %82 = vector.broadcast %4 : vector<2x1x8xf32> to vector<2x8x8xf32>
    %83 = arith.addf %81, %82 : vector<2x8x8xf32>
    %cst_29 = arith.constant dense<0xFF800000> : vector<2x8xf32>
    %84 = vector.multi_reduction <maximumf>, %83, %cst_29 [2] : vector<2x8x8xf32> to vector<2x8xf32>
    %85 = vector.shape_cast %84 : vector<2x8xf32> to vector<2x8x1xf32>
    %86 = vector.broadcast %85 : vector<2x8x1xf32> to vector<2x8x8xf32>
    %87 = arith.subf %83, %86 : vector<2x8x8xf32>
    %88 = math.exp %87 : vector<2x8x8xf32>
    %cst_30 = arith.constant dense<0.000000e+00> : vector<2x8xf32>
    %89 = vector.multi_reduction <add>, %88, %cst_30 [2] : vector<2x8x8xf32> to vector<2x8xf32>
    %90 = vector.shape_cast %89 : vector<2x8xf32> to vector<2x8x1xf32>
    %91 = tpu.reciprocal %90 {approx = true} : vector<2x8x1xf32> -> vector<2x8x1xf32>
    %92 = vector.broadcast %91 : vector<2x8x1xf32> to vector<2x8x8xf32>
    %93 = arith.mulf %88, %92 : vector<2x8x8xf32>
    %94 = arith.truncf %93 : vector<2x8x8xf32> to vector<2x8x8xbf16>
    "tpu.trace_start"() <{level = 10 : i32, message = "bqk,bkd->bqd"}> : () -> ()
    %cst_31 = arith.constant dense<0.000000e+00> : vector<2x8x8xf32>
    %95 = tpu.matmul %94, %78, %cst_31 {dimension_numbers = #tpu.dot_dimension_numbers<[2], [1], [1], [2], [0, 0, 0, 1, 1, 2], [0], [0]>} : vector<2x8x8xbf16>, vector<2x8x8xbf16>, vector<2x8x8xf32> -> vector<2x8x8xf32>
    "tpu.trace_stop"() : () -> ()
    %96 = vector.shape_cast %95 : vector<2x8x8xf32> to vector<16x8xf32>
    %97 = vector.extract_strided_slice %15 {offsets = [16, 0], sizes = [8, 32], strides = [1, 1]} : vector<32x32xbf16> to vector<8x32xbf16>
    %98 = arith.truncf %96 : vector<16x8xf32> to vector<16x8xbf16>
    %cst_32 = arith.constant dense<0.000000e+00> : vector<16x32xf32>
    %99 = tpu.matmul %98, %97, %cst_32 {dimension_numbers = #tpu.dot_dimension_numbers<[1], [0], [0], [1], [0, 0, 1, 1], [], []>} : vector<16x8xbf16>, vector<8x32xbf16>, vector<16x32xf32> -> vector<16x32xf32>
    %100 = arith.addf %72, %99 : vector<16x32xf32>
    %101 = vector.extract_strided_slice %13 {offsets = [0, 0, 24], sizes = [2, 8, 8], strides = [1, 1, 1]} : vector<2x8x96xf32> to vector<2x8x8xf32>
    %102 = arith.truncf %101 : vector<2x8x8xf32> to vector<2x8x8xbf16>
    %103 = vector.extract_strided_slice %13 {offsets = [0, 0, 56], sizes = [2, 8, 8], strides = [1, 1, 1]} : vector<2x8x96xf32> to vector<2x8x8xf32>
    %104 = arith.truncf %103 : vector<2x8x8xf32> to vector<2x8x8xbf16>
    %105 = vector.extract_strided_slice %13 {offsets = [0, 0, 88], sizes = [2, 8, 8], strides = [1, 1, 1]} : vector<2x8x96xf32> to vector<2x8x8xf32>
    %106 = arith.truncf %105 : vector<2x8x8xf32> to vector<2x8x8xbf16>
    "tpu.trace_start"() <{level = 10 : i32, message = "bqd,bkd->bqk"}> : () -> ()
    %cst_33 = arith.constant dense<0.000000e+00> : vector<2x8x8xf32>
    %107 = tpu.matmul %102, %104, %cst_33 {dimension_numbers = #tpu.dot_dimension_numbers<[2], [2], [1], [1], [0, 0, 0, 1, 1, 1], [0], [0]>} : vector<2x8x8xbf16>, vector<2x8x8xbf16>, vector<2x8x8xf32> -> vector<2x8x8xf32>
    "tpu.trace_stop"() : () -> ()
    %cst_34 = arith.constant 0.353553385 : f32
    %108 = vector.broadcast %cst_34 : f32 to vector<2x8x8xf32>
    %109 = arith.mulf %107, %108 : vector<2x8x8xf32>
    %110 = vector.broadcast %4 : vector<2x1x8xf32> to vector<2x8x8xf32>
    %111 = arith.addf %109, %110 : vector<2x8x8xf32>
    %cst_35 = arith.constant dense<0xFF800000> : vector<2x8xf32>
    %112 = vector.multi_reduction <maximumf>, %111, %cst_35 [2] : vector<2x8x8xf32> to vector<2x8xf32>
    %113 = vector.shape_cast %112 : vector<2x8xf32> to vector<2x8x1xf32>
    %114 = vector.broadcast %113 : vector<2x8x1xf32> to vector<2x8x8xf32>
    %115 = arith.subf %111, %114 : vector<2x8x8xf32>
    %116 = math.exp %115 : vector<2x8x8xf32>
    %cst_36 = arith.constant dense<0.000000e+00> : vector<2x8xf32>
    %117 = vector.multi_reduction <add>, %116, %cst_36 [2] : vector<2x8x8xf32> to vector<2x8xf32>
    %118 = vector.shape_cast %117 : vector<2x8xf32> to vector<2x8x1xf32>
    %119 = tpu.reciprocal %118 {approx = true} : vector<2x8x1xf32> -> vector<2x8x1xf32>
    %120 = vector.broadcast %119 : vector<2x8x1xf32> to vector<2x8x8xf32>
    %121 = arith.mulf %116, %120 : vector<2x8x8xf32>
    %122 = arith.truncf %121 : vector<2x8x8xf32> to vector<2x8x8xbf16>
    "tpu.trace_start"() <{level = 10 : i32, message = "bqk,bkd->bqd"}> : () -> ()
    %cst_37 = arith.constant dense<0.000000e+00> : vector<2x8x8xf32>
    %123 = tpu.matmul %122, %106, %cst_37 {dimension_numbers = #tpu.dot_dimension_numbers<[2], [1], [1], [2], [0, 0, 0, 1, 1, 2], [0], [0]>} : vector<2x8x8xbf16>, vector<2x8x8xbf16>, vector<2x8x8xf32> -> vector<2x8x8xf32>
    "tpu.trace_stop"() : () -> ()
    %124 = vector.shape_cast %123 : vector<2x8x8xf32> to vector<16x8xf32>
    %125 = vector.extract_strided_slice %15 {offsets = [24, 0], sizes = [8, 32], strides = [1, 1]} : vector<32x32xbf16> to vector<8x32xbf16>
    %126 = arith.truncf %124 : vector<16x8xf32> to vector<16x8xbf16>
    %cst_38 = arith.constant dense<0.000000e+00> : vector<16x32xf32>
    %127 = tpu.matmul %126, %125, %cst_38 {dimension_numbers = #tpu.dot_dimension_numbers<[1], [0], [0], [1], [0, 0, 1, 1], [], []>} : vector<16x8xbf16>, vector<8x32xbf16>, vector<16x32xf32> -> vector<16x32xf32>
    %128 = arith.addf %100, %127 : vector<16x32xf32>
    %c0_39 = arith.constant 0 : index
    %c0_40 = arith.constant 0 : index
    %c0_41 = arith.constant 0 : index
    %129 = vector.load %arg7[%c0_39, %c0_40, %c0_41] : memref<1x1x32xf32, #tpu.memory_space<vmem>>, vector<1x1x32xf32>
    %130 = vector.shape_cast %129 : vector<1x1x32xf32> to vector<1x32xf32>
    %131 = vector.broadcast %130 : vector<1x32xf32> to vector<16x32xf32>
    %132 = arith.addf %128, %131 : vector<16x32xf32>
    %c0_42 = arith.constant 0 : index
    %c0_43 = arith.constant 0 : index
    %c0_44 = arith.constant 0 : index
    %133 = vector.load %arg12[%c0_42, %c0_43, %c0_44] : memref<1x1x32xf32, #tpu.memory_space<vmem>>, vector<1x1x32xf32>
    %134 = vector.shape_cast %133 : vector<1x1x32xf32> to vector<1x32xf32>
    %c0_45 = arith.constant 0 : index
    %c0_46 = arith.constant 0 : index
    %c0_47 = arith.constant 0 : index
    %135 = vector.load %arg13[%c0_45, %c0_46, %c0_47] : memref<1x1x32xf32, #tpu.memory_space<vmem>>, vector<1x1x32xf32>
    %136 = vector.shape_cast %135 : vector<1x1x32xf32> to vector<1x32xf32>
    %137 = arith.addf %3, %132 : vector<16x32xf32>
    %cst_48 = arith.constant dense<0.000000e+00> : vector<16xf32>
    %138 = vector.multi_reduction <add>, %137, %cst_48 [1] : vector<16x32xf32> to vector<16xf32>
    %139 = vector.shape_cast %138 : vector<16xf32> to vector<16x1xf32>
    %cst_49 = arith.constant 3.200000e+01 : f32
    %140 = vector.broadcast %cst_49 : f32 to vector<16x1xf32>
    %141 = arith.divf %139, %140 : vector<16x1xf32>
    %142 = vector.broadcast %141 : vector<16x1xf32> to vector<16x32xf32>
    %143 = arith.subf %137, %142 : vector<16x32xf32>
    %144 = arith.mulf %143, %143 : vector<16x32xf32>
    %cst_50 = arith.constant dense<0.000000e+00> : vector<16xf32>
    %145 = vector.multi_reduction <add>, %144, %cst_50 [1] : vector<16x32xf32> to vector<16xf32>
    %146 = vector.shape_cast %145 : vector<16xf32> to vector<16x1xf32>
    %cst_51 = arith.constant 3.200000e+01 : f32
    %147 = vector.broadcast %cst_51 : f32 to vector<16x1xf32>
    %148 = arith.divf %146, %147 : vector<16x1xf32>
    %149 = vector.broadcast %141 : vector<16x1xf32> to vector<16x32xf32>
    %150 = arith.subf %137, %149 : vector<16x32xf32>
    %cst_52 = arith.constant 9.99999997E-7 : f32
    %151 = vector.broadcast %cst_52 : f32 to vector<16x1xf32>
    %152 = arith.addf %148, %151 : vector<16x1xf32>
    %153 = math.rsqrt %152 : vector<16x1xf32>
    %154 = vector.broadcast %153 : vector<16x1xf32> to vector<16x32xf32>
    %155 = arith.mulf %150, %154 : vector<16x32xf32>
    %156 = vector.broadcast %134 : vector<1x32xf32> to vector<16x32xf32>
    %157 = arith.mulf %155, %156 : vector<16x32xf32>
    %158 = vector.broadcast %136 : vector<1x32xf32> to vector<16x32xf32>
    %159 = arith.addf %157, %158 : vector<16x32xf32>
    %c0_53 = arith.constant 0 : index
    %c0_54 = arith.constant 0 : index
    %c0_55 = arith.constant 0 : index
    %160 = vector.load %arg8[%c0_53, %c0_54, %c0_55] : memref<1x32x64xbf16, #tpu.memory_space<vmem>>, vector<1x32x64xbf16>
    %161 = vector.shape_cast %160 : vector<1x32x64xbf16> to vector<32x64xbf16>
    %162 = arith.truncf %159 : vector<16x32xf32> to vector<16x32xbf16>
    %cst_56 = arith.constant dense<0.000000e+00> : vector<16x64xf32>
    %163 = tpu.matmul %162, %161, %cst_56 {dimension_numbers = #tpu.dot_dimension_numbers<[1], [0], [0], [1], [0, 0, 1, 1], [], []>} : vector<16x32xbf16>, vector<32x64xbf16>, vector<16x64xf32> -> vector<16x64xf32>
    %c0_57 = arith.constant 0 : index
    %c0_58 = arith.constant 0 : index
    %c0_59 = arith.constant 0 : index
    %164 = vector.load %arg9[%c0_57, %c0_58, %c0_59] : memref<1x1x64xf32, #tpu.memory_space<vmem>>, vector<1x1x64xf32>
    %165 = vector.shape_cast %164 : vector<1x1x64xf32> to vector<1x64xf32>
    %166 = vector.broadcast %165 : vector<1x64xf32> to vector<16x64xf32>
    %167 = arith.addf %163, %166 : vector<16x64xf32>
    %cst_60 = arith.constant 0.000000e+00 : f32
    %168 = vector.broadcast %cst_60 : f32 to vector<16x64xf32>
    %169 = arith.maximumf %167, %168 : vector<16x64xf32>
    %c0_61 = arith.constant 0 : index
    %c0_62 = arith.constant 0 : index
    %c0_63 = arith.constant 0 : index
    %170 = vector.load %arg10[%c0_61, %c0_62, %c0_63] : memref<1x64x32xbf16, #tpu.memory_space<vmem>>, vector<1x64x32xbf16>
    %171 = vector.shape_cast %170 : vector<1x64x32xbf16> to vector<64x32xbf16>
    %172 = arith.truncf %169 : vector<16x64xf32> to vector<16x64xbf16>
    %cst_64 = arith.constant dense<0.000000e+00> : vector<16x32xf32>
    %173 = tpu.matmul %172, %171, %cst_64 {dimension_numbers = #tpu.dot_dimension_numbers<[1], [0], [0], [1], [0, 0, 1, 1], [], []>} : vector<16x64xbf16>, vector<64x32xbf16>, vector<16x32xf32> -> vector<16x32xf32>
    %c0_65 = arith.constant 0 : index
    %c0_66 = arith.constant 0 : index
    %c0_67 = arith.constant 0 : index
    %174 = vector.load %arg11[%c0_65, %c0_66, %c0_67] : memref<1x1x32xf32, #tpu.memory_space<vmem>>, vector<1x1x32xf32>
    %175 = vector.shape_cast %174 : vector<1x1x32xf32> to vector<1x32xf32>
    %176 = vector.broadcast %175 : vector<1x32xf32> to vector<16x32xf32>
    %177 = arith.addf %173, %176 : vector<16x32xf32>
    %178 = arith.addf %159, %177 : vector<16x32xf32>
    %cst_68 = arith.constant dense<0.000000e+00> : vector<16xf32>
    %179 = vector.multi_reduction <add>, %178, %cst_68 [1] : vector<16x32xf32> to vector<16xf32>
    %180 = vector.shape_cast %179 : vector<16xf32> to vector<16x1xf32>
    %cst_69 = arith.constant 3.200000e+01 : f32
    %181 = vector.broadcast %cst_69 : f32 to vector<16x1xf32>
    %182 = arith.divf %180, %181 : vector<16x1xf32>
    %183 = vector.broadcast %182 : vector<16x1xf32> to vector<16x32xf32>
    %184 = arith.subf %178, %183 : vector<16x32xf32>
    %185 = arith.mulf %184, %184 : vector<16x32xf32>
    %cst_70 = arith.constant dense<0.000000e+00> : vector<16xf32>
    %186 = vector.multi_reduction <add>, %185, %cst_70 [1] : vector<16x32xf32> to vector<16xf32>
    %187 = vector.shape_cast %186 : vector<16xf32> to vector<16x1xf32>
    %cst_71 = arith.constant 3.200000e+01 : f32
    %188 = vector.broadcast %cst_71 : f32 to vector<16x1xf32>
    %189 = arith.divf %187, %188 : vector<16x1xf32>
    %190 = vector.broadcast %182 : vector<16x1xf32> to vector<16x32xf32>
    %191 = arith.subf %178, %190 : vector<16x32xf32>
    %cst_72 = arith.constant 9.99999997E-7 : f32
    %192 = vector.broadcast %cst_72 : f32 to vector<16x1xf32>
    %193 = arith.addf %189, %192 : vector<16x1xf32>
    %194 = math.rsqrt %193 : vector<16x1xf32>
    %195 = vector.broadcast %194 : vector<16x1xf32> to vector<16x32xf32>
    %196 = arith.mulf %191, %195 : vector<16x32xf32>
    %197 = vector.broadcast %134 : vector<1x32xf32> to vector<16x32xf32>
    %198 = arith.mulf %196, %197 : vector<16x32xf32>
    %199 = vector.broadcast %136 : vector<1x32xf32> to vector<16x32xf32>
    %200 = arith.addf %198, %199 : vector<16x32xf32>
    %c0_73 = arith.constant 0 : index
    %c0_74 = arith.constant 0 : index
    %201 = vector.load %arg15[%c0_73, %c0_74] : memref<16x32xf32, #tpu.memory_space<vmem>>, vector<16x32xf32>
    tpu.vector_store %arg15[%c0_73, %c0_74], %200 {strides = array<i32>} : memref<16x32xf32, #tpu.memory_space<vmem>>, vector<16x32xf32>,
    %c1_i32 = arith.constant 1 : i32
    %202 = arith.cmpi eq, %arg1, %c1_i32 : i32
    %203 = arith.extui %202 : i1 to i32
    %c0_i32_75 = arith.constant 0 : i32
    %204 = arith.cmpi ne, %203, %c0_i32_75 : i32
    scf.if %204 {
      %205 = vector.shape_cast %200 : vector<16x32xf32> to vector<2x8x32xf32>
      %c0_76 = arith.constant 0 : index
      %c0_77 = arith.constant 0 : index
      %c0_78 = arith.constant 0 : index
      %206 = vector.load %arg14[%c0_76, %c0_77, %c0_78] : memref<2x8x32xf32, #tpu.memory_space<vmem>>, vector<2x8x32xf32>
      tpu.vector_store %arg14[%c0_76, %c0_77, %c0_78], %205 {strides = array<i32>} : memref<2x8x32xf32, #tpu.memory_space<vmem>>, vector<2x8x32xf32>,
    } else {
    }
    return
  }
  func.func @transform_0(%arg0: i32, %arg1: i32) -> (i32, i32, i32) {
    %c0_i32 = arith.constant 0 : i32
    %c0_i32_0 = arith.constant 0 : i32
    %c0_i32_1 = arith.constant 0 : i32
    return %arg0, %c0_i32, %c0_i32_0 : i32, i32, i32
  }
  func.func @transform_1(%arg0: i32, %arg1: i32) -> (i32, i32, i32) {
    %c0_i32 = arith.constant 0 : i32
    %c0_i32_0 = arith.constant 0 : i32
    %c0_i32_1 = arith.constant 0 : i32
    return %arg0, %c0_i32, %c0_i32_0 : i32, i32, i32
  }
  func.func @transform_2(%arg0: i32, %arg1: i32) -> (i32, i32, i32) {
    %c0_i32 = arith.constant 0 : i32
    %c0_i32_0 = arith.constant 0 : i32
    %c0_i32_1 = arith.constant 0 : i32
    return %arg1, %c0_i32, %c0_i32_0 : i32, i32, i32
  }
  func.func @transform_3(%arg0: i32, %arg1: i32) -> (i32, i32, i32) {
    %c0_i32 = arith.constant 0 : i32
    %c0_i32_0 = arith.constant 0 : i32
    %c0_i32_1 = arith.constant 0 : i32
    return %arg1, %c0_i32, %c0_i32_0 : i32, i32, i32
  }
  func.func @transform_4(%arg0: i32, %arg1: i32) -> (i32, i32, i32) {
    %c0_i32 = arith.constant 0 : i32
    %c0_i32_0 = arith.constant 0 : i32
    %c0_i32_1 = arith.constant 0 : i32
    return %arg1, %c0_i32, %c0_i32_0 : i32, i32, i32
  }
  func.func @transform_5(%arg0: i32, %arg1: i32) -> (i32, i32, i32) {
    %c0_i32 = arith.constant 0 : i32
    %c0_i32_0 = arith.constant 0 : i32
    %c0_i32_1 = arith.constant 0 : i32
    return %arg1, %c0_i32, %c0_i32_0 : i32, i32, i32
  }
  func.func @transform_6(%arg0: i32, %arg1: i32) -> (i32, i32, i32) {
    %c0_i32 = arith.constant 0 : i32
    %c0_i32_0 = arith.constant 0 : i32
    %c0_i32_1 = arith.constant 0 : i32
    return %arg1, %c0_i32, %c0_i32_0 : i32, i32, i32
  }
  func.func @transform_7(%arg0: i32, %arg1: i32) -> (i32, i32, i32) {
    %c0_i32 = arith.constant 0 : i32
    %c0_i32_0 = arith.constant 0 : i32
    %c0_i32_1 = arith.constant 0 : i32
    return %arg1, %c0_i32, %c0_i32_0 : i32, i32, i32
  }
  func.func @transform_8(%arg0: i32, %arg1: i32) -> (i32, i32, i32) {
    %c0_i32 = arith.constant 0 : i32
    %c0_i32_0 = arith.constant 0 : i32
    %c0_i32_1 = arith.constant 0 : i32
    return %arg1, %c0_i32, %c0_i32_0 : i32, i32, i32
  }
  func.func @transform_9(%arg0: i32, %arg1: i32) -> (i32, i32, i32) {
    %c0_i32 = arith.constant 0 : i32
    %c0_i32_0 = arith.constant 0 : i32
    %c0_i32_1 = arith.constant 0 : i32
    return %arg1, %c0_i32, %c0_i32_0 : i32, i32, i32
  }
  func.func @transform_10(%arg0: i32, %arg1: i32) -> (i32, i32, i32) {
    %c0_i32 = arith.constant 0 : i32
    %c0_i32_0 = arith.constant 0 : i32
    %c0_i32_1 = arith.constant 0 : i32
    return %arg1, %c0_i32, %c0_i32_0 : i32, i32, i32
  }
  func.func @transform_11(%arg0: i32, %arg1: i32) -> (i32, i32, i32) {
    %c0_i32 = arith.constant 0 : i32
    %c0_i32_0 = arith.constant 0 : i32
    %c0_i32_1 = arith.constant 0 : i32
    return %arg1, %c0_i32, %c0_i32_0 : i32, i32, i32
  }
  func.func @transform_12(%arg0: i32, %arg1: i32) -> (i32, i32, i32) {
    %c0_i32 = arith.constant 0 : i32
    %c0_i32_0 = arith.constant 0 : i32
    %c0_i32_1 = arith.constant 0 : i32
    return %arg0, %c0_i32, %c0_i32_0 : i32, i32, i32
  }
}

</mosaic_0001>

<llo_original>
// kernel: tpu_custom_call.1
$region0: #{tpu_custom_call.1}
  #allocation0 [shape = 'u32[]', space=smem, size = 0x4, offset = 0x4, fixed_abs, tag = 'smem constant byte address 0x4 - core index']
  #allocation1 [shape = 'u32[72,128]{1,0:T(1,128)}', space=vmem, size = 0x9000, scoped, tag = 'internal scratch']
  #allocation2 [shape = 'f32[16,32]{1,0:T(8,128)}', space=vmem, size = 0x2000, scoped, tag = 'scratch operand']
  %s0 = inlined_call_operand.hbm [shape: f32[2,8,32], index: 0, kind: input, shape index: {}]
  %s1 = inlined_call_operand.hbm [shape: f32[2,1,8], index: 1, kind: input, shape index: {}]
  %s2 = inlined_call_operand.vmem [shape: bf16[2,32,96], index: 2, kind: input, shape index: {}]
  %s3 = inlined_call_operand.hbm [shape: f32[2,1,96], index: 3, kind: input, shape index: {}]
  %s4 = inlined_call_operand.vmem [shape: bf16[2,32,32], index: 4, kind: input, shape index: {}]
  %s5 = inlined_call_operand.vmem [shape: f32[2,1,32], index: 5, kind: input, shape index: {}]
  %s6 = inlined_call_operand.vmem [shape: bf16[2,32,64], index: 6, kind: input, shape index: {}]
  %s7 = inlined_call_operand.vmem [shape: f32[2,1,64], index: 7, kind: input, shape index: {}]
  %s8 = inlined_call_operand.vmem [shape: bf16[2,64,32], index: 8, kind: input, shape index: {}]
  %s9 = inlined_call_operand.vmem [shape: f32[2,1,32], index: 9, kind: input, shape index: {}]
  %s10 = inlined_call_operand.vmem [shape: f32[2,1,32], index: 10, kind: input, shape index: {}]
  %s11 = inlined_call_operand.hbm [shape: f32[2,1,32], index: 11, kind: input, shape index: {}]
  %s12 = inlined_call_operand.hbm [shape: f32[2,8,32], index: 12, kind: output, shape index: {}]
  %s13 = sld [smem:[#allocation0]]
  $region105: #{tpu_custom_call.1} parent=0
    _
  %s15 = ssub.s32 1, %s13
  %s16 = scalar_select 0, %s15, %s13
  $region1: #{tpu_custom_call.1} parent=0
    #allocation3 [shape = 'u8[8192]{0}', space=vmem, size = 0x2000, scoped, tag = 'input window, operand 0, single buffered']
    #allocation4 [shape = 's32[2]{0}', space=sflag, size = 0x8, scoped, tag = 'scoped memory for tpu_custom_call.1']
    #allocation5 [shape = 's32[2]{0}', space=sflag, size = 0x8, scoped, tag = 'scoped memory for tpu_custom_call.1']
    #allocation6 [shape = 'u8[1024]{0}', space=vmem, size = 0x400, scoped, tag = 'input window, operand 1, single buffered']
    #allocation7 [shape = 's32[1]{0}', space=sflag, size = 0x4, scoped, tag = 'scoped memory for tpu_custom_call.1']
    #allocation8 [shape = 'u8[1024]{0}', space=vmem, size = 0x400, scoped, tag = 'input window, operand 3']
    #allocation9 [shape = 'u8[1024]{0}', space=vmem, size = 0x400, scoped, tag = 'input window, operand 11']
    #allocation10 [shape = 'u8[8192]{0}', space=vmem, size = 0x2000, scoped, tag = 'output window, operand 0, single buffered']
    %17 = vsyncpa [#allocation4], 0
    %18 = vsyncpa [#allocation7], 0
    %19 = vsyncpa [#allocation5], 0
    loop: start=0, step=1, limit=4
    $region2: #{tpu_custom_call.1} parent=1 // loop_pre_header
      _
    $region3: #{tpu_custom_call.1} parent=1 // loop_header
      %s21 = sphi 0, %s25
      %p22 = scmp.ge.s32.totalorder %s21, 4
      %s28 = sphi 0, %s40
      %s29 = sphi 0, %s36
      %s30 = sphi 0, %s28
      %s31 = sphi 0, %s29
      %s32 = sphi 0, %s30
      %s33 = sphi 0, %s31
      %s43 = sphi 0, %s45
      %s46 = sphi 0, %s43
      %s47 = sphi 0, %s46
      %s63 = sphi 0, %s47
      %s69 = sphi 0, %s71
      %s72 = sphi 0, %s69
      %s73 = sphi 0, %s72
      %s89 = sphi 0, %s73
      %s95 = sphi 0, %s97
      %s98 = sphi 0, %s95
      %s99 = sphi 0, %s98
      %s115 = sphi 0, %s99
      %s121 = sphi 0, %s123
      %s124 = sphi 0, %s121
      %s125 = sphi 0, %s124
      %s141 = sphi 0, %s125
      %s147 = sphi 0, %s149
      %s150 = sphi 0, %s147
      %s151 = sphi 0, %s150
      %s167 = sphi 0, %s151
      %s173 = sphi 0, %s175
      %s176 = sphi 0, %s173
      %s177 = sphi 0, %s176
      %s193 = sphi 0, %s177
      %s199 = sphi 0, %s201
      %s202 = sphi 0, %s199
      %s203 = sphi 0, %s202
      %s219 = sphi 0, %s203
      %s225 = sphi 0, %s227
      %s228 = sphi 0, %s225
      %s229 = sphi 0, %s228
      %s245 = sphi 0, %s229
      %s251 = sphi 0, %s253
      %s254 = sphi 0, %s251
      %s255 = sphi 0, %s254
      %s271 = sphi 0, %s255
      %s277 = sphi 0, %s279
      %s280 = sphi 0, %s277
      %s281 = sphi 0, %s280
      %s297 = sphi 0, %s281
      %s303 = sphi 0, %s305
      %s306 = sphi 0, %s303
      %s307 = sphi 0, %s306
      %s323 = sphi 0, %s307
      %s329 = sphi 0, %s331
      %s332 = sphi 0, %s329
      %s333 = sphi 0, %s332
      %s349 = sphi 0, %s333
      %s355 = sphi 0, %s357
      %s358 = sphi 0, %s355
      %s359 = sphi 0, %s358
      %s375 = sphi 0, %s359
    $region4: #{tpu_custom_call.1} parent=1 // loop_header_branch
      %24 = sbr.rel (%p22) target = $region8
    $region5: #{tpu_custom_call.1} parent=1 // loop_body
      %s26 = ssub.s32 %s21, 1
      %s27 = ssub.s32 %s21, 2
      %s34 = sadd.s32 1, %s29
      %p35 = scmp.ge.s32.totalorder %s34, 2
      %s36 = scalar_select %p35, 0, %s34
      %s37 = sadd.s32 1, %s28
      %s38 = scalar_select %p35, %s37, %s28
      %p39 = scmp.ge.s32.totalorder %s38, 1
      %s40 = scalar_select %p39, 0, %s38
      %s41 = ssub.s32 %s28, %s40
      %p42 = scmp.eq.s32.totalorder %s41, 0
      %s44 = sadd.s32 %s43, 1
      %s45 = scalar_select %p42, %s43, %s44
      %p48 = pneg %p42
      %p49 = scmp.eq.s32.totalorder %s21, 1
      %p50 = por %p48, %p49
      %p51 = scmp.ne.s32.totalorder %s43, %s46
      %p52 = scmp.eq.s32.totalorder %s21, 0
      %p53 = por %p51, %p52
      %p54 = scmp.ne.s32.totalorder %s43, %s46
      %p55 = scmp.eq.s32.totalorder %s26, 1
      %p56 = por %p54, %p55
      %p57 = scmp.ne.s32.totalorder %s46, %s47
      %p58 = scmp.eq.s32.totalorder %s26, 0
      %p59 = por %p57, %p58
      %p60 = scmp.ne.s32.totalorder %s46, %s47
      %p61 = scmp.eq.s32.totalorder %s27, 1
      %p62 = por %p60, %p61
      %p64 = scmp.ne.s32.totalorder %s47, %s63
      %p65 = scmp.eq.s32.totalorder %s27, 0
      %p66 = por %p64, %p65
      %s67 = ssub.s32 %s28, %s40
      %p68 = scmp.eq.s32.totalorder %s67, 0
      %s70 = sadd.s32 %s69, 1
      %s71 = scalar_select %p68, %s69, %s70
      %p74 = pneg %p68
      %p75 = scmp.eq.s32.totalorder %s21, 1
      %p76 = por %p74, %p75
      %p77 = scmp.ne.s32.totalorder %s69, %s72
      %p78 = scmp.eq.s32.totalorder %s21, 0
      %p79 = por %p77, %p78
      %p80 = scmp.ne.s32.totalorder %s69, %s72
      %p81 = scmp.eq.s32.totalorder %s26, 1
      %p82 = por %p80, %p81
      %p83 = scmp.ne.s32.totalorder %s72, %s73
      %p84 = scmp.eq.s32.totalorder %s26, 0
      %p85 = por %p83, %p84
      %p86 = scmp.ne.s32.totalorder %s72, %s73
      %p87 = scmp.eq.s32.totalorder %s27, 1
      %p88 = por %p86, %p87
      %p90 = scmp.ne.s32.totalorder %s73, %s89
      %p91 = scmp.eq.s32.totalorder %s27, 0
      %p92 = por %p90, %p91
      %s93 = ssub.s32 %s29, %s36
      %p94 = scmp.eq.s32.totalorder %s93, 0
      %s96 = sadd.s32 %s95, 1
      %s97 = scalar_select %p94, %s95, %s96
      %p100 = pneg %p94
      %p101 = scmp.eq.s32.totalorder %s21, 1
      %p102 = por %p100, %p101
      %p103 = scmp.ne.s32.totalorder %s95, %s98
      %p104 = scmp.eq.s32.totalorder %s21, 0
      %p105 = por %p103, %p104
      %p106 = scmp.ne.s32.totalorder %s95, %s98
      %p107 = scmp.eq.s32.totalorder %s26, 1
      %p108 = por %p106, %p107
      %p109 = scmp.ne.s32.totalorder %s98, %s99
      %p110 = scmp.eq.s32.totalorder %s26, 0
      %p111 = por %p109, %p110
      %p112 = scmp.ne.s32.totalorder %s98, %s99
      %p113 = scmp.eq.s32.totalorder %s27, 1
      %p114 = por %p112, %p113
      %p116 = scmp.ne.s32.totalorder %s99, %s115
      %p117 = scmp.eq.s32.totalorder %s27, 0
      %p118 = por %p116, %p117
      %s119 = ssub.s32 %s29, %s36
      %p120 = scmp.eq.s32.totalorder %s119, 0
      %s122 = sadd.s32 %s121, 1
      %s123 = scalar_select %p120, %s121, %s122
      %p126 = pneg %p120
      %p127 = scmp.eq.s32.totalorder %s21, 1
      %p128 = por %p126, %p127
      %p129 = scmp.ne.s32.totalorder %s121, %s124
      %p130 = scmp.eq.s32.totalorder %s21, 0
      %p131 = por %p129, %p130
      %p132 = scmp.ne.s32.totalorder %s121, %s124
      %p133 = scmp.eq.s32.totalorder %s26, 1
      %p134 = por %p132, %p133
      %p135 = scmp.ne.s32.totalorder %s124, %s125
      %p136 = scmp.eq.s32.totalorder %s26, 0
      %p137 = por %p135, %p136
      %p138 = scmp.ne.s32.totalorder %s124, %s125
      %p139 = scmp.eq.s32.totalorder %s27, 1
      %p140 = por %p138, %p139
      %p142 = scmp.ne.s32.totalorder %s125, %s141
      %p143 = scmp.eq.s32.totalorder %s27, 0
      %p144 = por %p142, %p143
      %s145 = ssub.s32 %s29, %s36
      %p146 = scmp.eq.s32.totalorder %s145, 0
      %s148 = sadd.s32 %s147, 1
      %s149 = scalar_select %p146, %s147, %s148
      %p152 = pneg %p146
      %p153 = scmp.eq.s32.totalorder %s21, 1
      %p154 = por %p152, %p153
      %p155 = scmp.ne.s32.totalorder %s147, %s150
      %p156 = scmp.eq.s32.totalorder %s21, 0
      %p157 = por %p155, %p156
      %p158 = scmp.ne.s32.totalorder %s147, %s150
      %p159 = scmp.eq.s32.totalorder %s26, 1
      %p160 = por %p158, %p159
      %p161 = scmp.ne.s32.totalorder %s150, %s151
      %p162 = scmp.eq.s32.totalorder %s26, 0
      %p163 = por %p161, %p162
      %p164 = scmp.ne.s32.totalorder %s150, %s151
      %p165 = scmp.eq.s32.totalorder %s27, 1
      %p166 = por %p164, %p165
      %p168 = scmp.ne.s32.totalorder %s151, %s167
      %p169 = scmp.eq.s32.totalorder %s27, 0
      %p170 = por %p168, %p169
      %s171 = ssub.s32 %s29, %s36
      %p172 = scmp.eq.s32.totalorder %s171, 0
      %s174 = sadd.s32 %s173, 1
      %s175 = scalar_select %p172, %s173, %s174
      %p178 = pneg %p172
      %p179 = scmp.eq.s32.totalorder %s21, 1
      %p180 = por %p178, %p179
      %p181 = scmp.ne.s32.totalorder %s173, %s176
      %p182 = scmp.eq.s32.totalorder %s21, 0
      %p183 = por %p181, %p182
      %p184 = scmp.ne.s32.totalorder %s173, %s176
      %p185 = scmp.eq.s32.totalorder %s26, 1
      %p186 = por %p184, %p185
      %p187 = scmp.ne.s32.totalorder %s176, %s177
      %p188 = scmp.eq.s32.totalorder %s26, 0
      %p189 = por %p187, %p188
      %p190 = scmp.ne.s32.totalorder %s176, %s177
      %p191 = scmp.eq.s32.totalorder %s27, 1
      %p192 = por %p190, %p191
      %p194 = scmp.ne.s32.totalorder %s177, %s193
      %p195 = scmp.eq.s32.totalorder %s27, 0
      %p196 = por %p194, %p195
      %s197 = ssub.s32 %s29, %s36
      %p198 = scmp.eq.s32.totalorder %s197, 0
      %s200 = sadd.s32 %s199, 1
      %s201 = scalar_select %p198, %s199, %s200
      %p204 = pneg %p198
      %p205 = scmp.eq.s32.totalorder %s21, 1
      %p206 = por %p204, %p205
      %p207 = scmp.ne.s32.totalorder %s199, %s202
      %p208 = scmp.eq.s32.totalorder %s21, 0
      %p209 = por %p207, %p208
      %p210 = scmp.ne.s32.totalorder %s199, %s202
      %p211 = scmp.eq.s32.totalorder %s26, 1
      %p212 = por %p210, %p211
      %p213 = scmp.ne.s32.totalorder %s202, %s203
      %p214 = scmp.eq.s32.totalorder %s26, 0
      %p215 = por %p213, %p214
      %p216 = scmp.ne.s32.totalorder %s202, %s203
      %p217 = scmp.eq.s32.totalorder %s27, 1
      %p218 = por %p216, %p217
      %p220 = scmp.ne.s32.totalorder %s203, %s219
      %p221 = scmp.eq.s32.totalorder %s27, 0
      %p222 = por %p220, %p221
      %s223 = ssub.s32 %s29, %s36
      %p224 = scmp.eq.s32.totalorder %s223, 0
      %s226 = sadd.s32 %s225, 1
      %s227 = scalar_select %p224, %s225, %s226
      %p230 = pneg %p224
      %p231 = scmp.eq.s32.totalorder %s21, 1
      %p232 = por %p230, %p231
      %p233 = scmp.ne.s32.totalorder %s225, %s228
      %p234 = scmp.eq.s32.totalorder %s21, 0
      %p235 = por %p233, %p234
      %p236 = scmp.ne.s32.totalorder %s225, %s228
      %p237 = scmp.eq.s32.totalorder %s26, 1
      %p238 = por %p236, %p237
      %p239 = scmp.ne.s32.totalorder %s228, %s229
      %p240 = scmp.eq.s32.totalorder %s26, 0
      %p241 = por %p239, %p240
      %p242 = scmp.ne.s32.totalorder %s228, %s229
      %p243 = scmp.eq.s32.totalorder %s27, 1
      %p244 = por %p242, %p243
      %p246 = scmp.ne.s32.totalorder %s229, %s245
      %p247 = scmp.eq.s32.totalorder %s27, 0
      %p248 = por %p246, %p247
      %s249 = ssub.s32 %s29, %s36
      %p250 = scmp.eq.s32.totalorder %s249, 0
      %s252 = sadd.s32 %s251, 1
      %s253 = scalar_select %p250, %s251, %s252
      %p256 = pneg %p250
      %p257 = scmp.eq.s32.totalorder %s21, 1
      %p258 = por %p256, %p257
      %p259 = scmp.ne.s32.totalorder %s251, %s254
      %p260 = scmp.eq.s32.totalorder %s21, 0
      %p261 = por %p259, %p260
      %p262 = scmp.ne.s32.totalorder %s251, %s254
      %p263 = scmp.eq.s32.totalorder %s26, 1
      %p264 = por %p262, %p263
      %p265 = scmp.ne.s32.totalorder %s254, %s255
      %p266 = scmp.eq.s32.totalorder %s26, 0
      %p267 = por %p265, %p266
      %p268 = scmp.ne.s32.totalorder %s254, %s255
      %p269 = scmp.eq.s32.totalorder %s27, 1
      %p270 = por %p268, %p269
      %p272 = scmp.ne.s32.totalorder %s255, %s271
      %p273 = scmp.eq.s32.totalorder %s27, 0
      %p274 = por %p272, %p273
      %s275 = ssub.s32 %s29, %s36
      %p276 = scmp.eq.s32.totalorder %s275, 0
      %s278 = sadd.s32 %s277, 1
      %s279 = scalar_select %p276, %s277, %s278
      %p282 = pneg %p276
      %p283 = scmp.eq.s32.totalorder %s21, 1
      %p284 = por %p282, %p283
      %p285 = scmp.ne.s32.totalorder %s277, %s280
      %p286 = scmp.eq.s32.totalorder %s21, 0
      %p287 = por %p285, %p286
      %p288 = scmp.ne.s32.totalorder %s277, %s280
      %p289 = scmp.eq.s32.totalorder %s26, 1
      %p290 = por %p288, %p289
      %p291 = scmp.ne.s32.totalorder %s280, %s281
      %p292 = scmp.eq.s32.totalorder %s26, 0
      %p293 = por %p291, %p292
      %p294 = scmp.ne.s32.totalorder %s280, %s281
      %p295 = scmp.eq.s32.totalorder %s27, 1
      %p296 = por %p294, %p295
      %p298 = scmp.ne.s32.totalorder %s281, %s297
      %p299 = scmp.eq.s32.totalorder %s27, 0
      %p300 = por %p298, %p299
      %s301 = ssub.s32 %s29, %s36
      %p302 = scmp.eq.s32.totalorder %s301, 0
      %s304 = sadd.s32 %s303, 1
      %s305 = scalar_select %p302, %s303, %s304
      %p308 = pneg %p302
      %p309 = scmp.eq.s32.totalorder %s21, 1
      %p310 = por %p308, %p309
      %p311 = scmp.ne.s32.totalorder %s303, %s306
      %p312 = scmp.eq.s32.totalorder %s21, 0
      %p313 = por %p311, %p312
      %p314 = scmp.ne.s32.totalorder %s303, %s306
      %p315 = scmp.eq.s32.totalorder %s26, 1
      %p316 = por %p314, %p315
      %p317 = scmp.ne.s32.totalorder %s306, %s307
      %p318 = scmp.eq.s32.totalorder %s26, 0
      %p319 = por %p317, %p318
      %p320 = scmp.ne.s32.totalorder %s306, %s307
      %p321 = scmp.eq.s32.totalorder %s27, 1
      %p322 = por %p320, %p321
      %p324 = scmp.ne.s32.totalorder %s307, %s323
      %p325 = scmp.eq.s32.totalorder %s27, 0
      %p326 = por %p324, %p325
      %s327 = ssub.s32 %s29, %s36
      %p328 = scmp.eq.s32.totalorder %s327, 0
      %s330 = sadd.s32 %s329, 1
      %s331 = scalar_select %p328, %s329, %s330
      %p334 = pneg %p328
      %p335 = scmp.eq.s32.totalorder %s21, 1
      %p336 = por %p334, %p335
      %p337 = scmp.ne.s32.totalorder %s329, %s332
      %p338 = scmp.eq.s32.totalorder %s21, 0
      %p339 = por %p337, %p338
      %p340 = scmp.ne.s32.totalorder %s329, %s332
      %p341 = scmp.eq.s32.totalorder %s26, 1
      %p342 = por %p340, %p341
      %p343 = scmp.ne.s32.totalorder %s332, %s333
      %p344 = scmp.eq.s32.totalorder %s26, 0
      %p345 = por %p343, %p344
      %p346 = scmp.ne.s32.totalorder %s332, %s333
      %p347 = scmp.eq.s32.totalorder %s27, 1
      %p348 = por %p346, %p347
      %p350 = scmp.ne.s32.totalorder %s333, %s349
      %p351 = scmp.eq.s32.totalorder %s27, 0
      %p352 = por %p350, %p351
      %s353 = ssub.s32 %s28, %s40
      %p354 = scmp.eq.s32.totalorder %s353, 0
      %s356 = sadd.s32 %s355, 1
      %s357 = scalar_select %p354, %s355, %s356
      %p360 = pneg %p354
      %p361 = scmp.eq.s32.totalorder %s21, 1
      %p362 = por %p360, %p361
      %p363 = scmp.ne.s32.totalorder %s355, %s358
      %p364 = scmp.eq.s32.totalorder %s21, 0
      %p365 = por %p363, %p364
      %p366 = scmp.ne.s32.totalorder %s355, %s358
      %p367 = scmp.eq.s32.totalorder %s26, 1
      %p368 = por %p366, %p367
      %p369 = scmp.ne.s32.totalorder %s358, %s359
      %p370 = scmp.eq.s32.totalorder %s26, 0
      %p371 = por %p369, %p370
      %p372 = scmp.ne.s32.totalorder %s358, %s359
      %p373 = scmp.eq.s32.totalorder %s27, 1
      %p374 = por %p372, %p373
      %p376 = scmp.ne.s32.totalorder %s359, %s375
      %p377 = scmp.eq.s32.totalorder %s27, 0
      %p378 = por %p376, %p377
      %p379 = scmp.le.s32.totalorder 1, %s21
      %p380 = scmp.lt.s32.totalorder %s21, 3
      %p381 = pnand %p379, %p380
      %p382 = pneg %p381
      // Predicated region
      $region9: #{tpu_custom_call.1} parent=5 // pred_check
        _
      $region10: #{tpu_custom_call.1} parent=5 // pred_check_branch
        %384 = sbr.rel (%p381) target = $region12
      $region11: #{tpu_custom_call.1} parent=5 // pred_region
        %s385 = ssub.s32 %s21, 1
        // Predicated region
        $region13: #{tpu_custom_call.1} parent=11 // pred_check
          %p386 = pneg %p59
        $region14: #{tpu_custom_call.1} parent=11 // pred_check_branch
          %388 = sbr.rel (%p386) target = $region16
        $region15: #{tpu_custom_call.1} parent=11 // pred_region
          %s389 = smul.u32 2, %s30
          %391 = vsyncadd [#allocation4], 0
          %s392 = smul.addr %s389, 8
          %s393 = scalar_lea.hbm %s0, %s392
          %s394 = sshll.u32 %s393, 4
          %s395 = int_to_ptr.hbm [resolvable:$true] %s394
          %s396 = sshll.u32 [#allocation3], 4
          %s397 = int_to_ptr.vmem [resolvable:$true] %s396
          %402 = dma.hbm_to_vmem [thread:$0]  %s395, 256, %s397, [#allocation4], 128, 128, 8
        $region16: #{tpu_custom_call.1} parent=11 // pred_fallthru
          _
        // Predicated region
        $region17: #{tpu_custom_call.1} parent=11 // pred_check
          %p403 = pneg %p85
        $region18: #{tpu_custom_call.1} parent=11 // pred_check_branch
          %405 = sbr.rel (%p403) target = $region20
        $region19: #{tpu_custom_call.1} parent=11 // pred_region
          %s406 = smul.u32 2, %s30
          %408 = vsyncadd [#allocation7], 0
          %s409 = scalar_lea.hbm %s1, %s406
          %s410 = sshll.u32 %s409, 4
          %s411 = int_to_ptr.hbm [resolvable:$true] %s410
          %s412 = sshll.u32 [#allocation6], 4
          %s413 = int_to_ptr.vmem [resolvable:$true] %s412
          %418 = dma.hbm_to_vmem [thread:$0]  %s411, 32, %s413, [#allocation7], 16, 16, 1
        $region20: #{tpu_custom_call.1} parent=11 // pred_fallthru
          _
      $region12: #{tpu_custom_call.1} parent=5 // pred_fallthru
        _
      %p419 = scmp.lt.s32.totalorder %s21, 2
      // Predicated region
      $region21: #{tpu_custom_call.1} parent=5 // pred_check
        %p420 = pneg %p419
      $region22: #{tpu_custom_call.1} parent=5 // pred_check_branch
        %422 = sbr.rel (%p420) target = $region24
      $region23: #{tpu_custom_call.1} parent=5 // pred_region
        // Predicated region
        $region25: #{tpu_custom_call.1} parent=23 // pred_check
          %p423 = pneg %p105
        $region26: #{tpu_custom_call.1} parent=23 // pred_check_branch
          %425 = sbr.rel (%p423) target = $region28
        $region27: #{tpu_custom_call.1} parent=23 // pred_region
          %p426 = scmp.lt.s32.totalorder %s29, 1
          %s427 = scalar_select %p426, %s29, 1
          %s428 = smul.addr %s427, 4
          %s429 = smul.addr %s428, 4
          %s430 = scalar_lea.vmem %s2, %s429
        $region28: #{tpu_custom_call.1} parent=23 // pred_fallthru
          _
        // Predicated region
        $region29: #{tpu_custom_call.1} parent=23 // pred_check
          %p431 = pneg %p131
        $region30: #{tpu_custom_call.1} parent=23 // pred_check_branch
          %433 = sbr.rel (%p431) target = $region32
        $region31: #{tpu_custom_call.1} parent=23 // pred_region
          %s434 = sand.u32 %s21, 1
          %s435 = scalar_lea.sflag [#allocation4], %s434
          %s436 = sand.u32 %s121, 1
          %s437 = scalar_lea.vmem [#allocation8], %s436
          %439 = vsyncadd %s435, 0
          %s440 = scalar_lea.hbm %s3, %s29
          %s442 = sshll.u32 %s440, 4
          %s443 = int_to_ptr.hbm [resolvable:$true] %s442
          %s444 = sshll.u32 %s437, 4
          %s445 = int_to_ptr.vmem [resolvable:$true] %s444
          %447 = dma.hbm_to_vmem [thread:$0]  %s443, 16, %s445, %s435
        $region32: #{tpu_custom_call.1} parent=23 // pred_fallthru
          _
        // Predicated region
        $region33: #{tpu_custom_call.1} parent=23 // pred_check
          %p448 = pneg %p157
        $region34: #{tpu_custom_call.1} parent=23 // pred_check_branch
          %450 = sbr.rel (%p448) target = $region36
        $region35: #{tpu_custom_call.1} parent=23 // pred_region
          %p451 = scmp.lt.s32.totalorder %s29, 1
          %s452 = scalar_select %p451, %s29, 1
          %s453 = smul.addr %s452, 4
          %s454 = smul.addr %s453, 4
          %s455 = scalar_lea.vmem %s4, %s454
        $region36: #{tpu_custom_call.1} parent=23 // pred_fallthru
          _
        // Predicated region
        $region37: #{tpu_custom_call.1} parent=23 // pred_check
          %p456 = pneg %p183
        $region38: #{tpu_custom_call.1} parent=23 // pred_check_branch
          %458 = sbr.rel (%p456) target = $region40
        $region39: #{tpu_custom_call.1} parent=23 // pred_region
          %p459 = scmp.lt.s32.totalorder %s29, 1
          %s460 = scalar_select %p459, %s29, 1
          %s461 = scalar_lea.vmem %s5, %s460
        $region40: #{tpu_custom_call.1} parent=23 // pred_fallthru
          _
        // Predicated region
        $region41: #{tpu_custom_call.1} parent=23 // pred_check
          %p462 = pneg %p209
        $region42: #{tpu_custom_call.1} parent=23 // pred_check_branch
          %464 = sbr.rel (%p462) target = $region44
        $region43: #{tpu_custom_call.1} parent=23 // pred_region
          %p465 = scmp.lt.s32.totalorder %s29, 1
          %s466 = scalar_select %p465, %s29, 1
          %s467 = smul.addr %s466, 4
          %s468 = smul.addr %s467, 4
          %s469 = scalar_lea.vmem %s6, %s468
        $region44: #{tpu_custom_call.1} parent=23 // pred_fallthru
          _
        // Predicated region
        $region45: #{tpu_custom_call.1} parent=23 // pred_check
          %p470 = pneg %p235
        $region46: #{tpu_custom_call.1} parent=23 // pred_check_branch
          %472 = sbr.rel (%p470) target = $region48
        $region47: #{tpu_custom_call.1} parent=23 // pred_region
          %p473 = scmp.lt.s32.totalorder %s29, 1
          %s474 = scalar_select %p473, %s29, 1
          %s475 = scalar_lea.vmem %s7, %s474
        $region48: #{tpu_custom_call.1} parent=23 // pred_fallthru
          _
        // Predicated region
        $region49: #{tpu_custom_call.1} parent=23 // pred_check
          %p476 = pneg %p261
        $region50: #{tpu_custom_call.1} parent=23 // pred_check_branch
          %478 = sbr.rel (%p476) target = $region52
        $region51: #{tpu_custom_call.1} parent=23 // pred_region
          %p479 = scmp.lt.s32.totalorder %s29, 1
          %s480 = scalar_select %p479, %s29, 1
          %s481 = smul.addr %s480, 8
          %s482 = smul.addr %s481, 4
          %s483 = scalar_lea.vmem %s8, %s482
        $region52: #{tpu_custom_call.1} parent=23 // pred_fallthru
          _
        // Predicated region
        $region53: #{tpu_custom_call.1} parent=23 // pred_check
          %p484 = pneg %p287
        $region54: #{tpu_custom_call.1} parent=23 // pred_check_branch
          %486 = sbr.rel (%p484) target = $region56
        $region55: #{tpu_custom_call.1} parent=23 // pred_region
          %p487 = scmp.lt.s32.totalorder %s29, 1
          %s488 = scalar_select %p487, %s29, 1
          %s489 = scalar_lea.vmem %s9, %s488
        $region56: #{tpu_custom_call.1} parent=23 // pred_fallthru
          _
        // Predicated region
        $region57: #{tpu_custom_call.1} parent=23 // pred_check
          %p490 = pneg %p313
        $region58: #{tpu_custom_call.1} parent=23 // pred_check_branch
          %492 = sbr.rel (%p490) target = $region60
        $region59: #{tpu_custom_call.1} parent=23 // pred_region
          %p493 = scmp.lt.s32.totalorder %s29, 1
          %s494 = scalar_select %p493, %s29, 1
          %s495 = scalar_lea.vmem %s10, %s494
        $region60: #{tpu_custom_call.1} parent=23 // pred_fallthru
          _
        // Predicated region
        $region61: #{tpu_custom_call.1} parent=23 // pred_check
          %p496 = pneg %p339
        $region62: #{tpu_custom_call.1} parent=23 // pred_check_branch
          %498 = sbr.rel (%p496) target = $region64
        $region63: #{tpu_custom_call.1} parent=23 // pred_region
          %s499 = sand.u32 %s21, 1
          %s500 = scalar_lea.sflag [#allocation4], %s499
          %s501 = sand.u32 %s329, 1
          %s502 = scalar_lea.vmem [#allocation9], %s501
          %504 = vsyncadd %s500, 0
          %s505 = scalar_lea.hbm %s11, %s29
          %s507 = sshll.u32 %s505, 4
          %s508 = int_to_ptr.hbm [resolvable:$true] %s507
          %s509 = sshll.u32 %s502, 4
          %s510 = int_to_ptr.vmem [resolvable:$true] %s509
          %512 = dma.hbm_to_vmem [thread:$0]  %s508, 16, %s510, %s500
        $region64: #{tpu_custom_call.1} parent=23 // pred_fallthru
          _
      $region24: #{tpu_custom_call.1} parent=5 // pred_fallthru
        _
      %p513 = scmp.le.s32.totalorder 1, %s21
      %p514 = scmp.lt.s32.totalorder %s21, 3
      %p515 = pnand %p513, %p514
      %p516 = pneg %p515
      // Predicated region
      $region65: #{tpu_custom_call.1} parent=5 // pred_check
        _
      $region66: #{tpu_custom_call.1} parent=5 // pred_check_branch
        %518 = sbr.rel (%p515) target = $region68
      $region67: #{tpu_custom_call.1} parent=5 // pred_region
        %s519 = ssub.s32 %s21, 1
        // Predicated region
        $region69: #{tpu_custom_call.1} parent=67 // pred_check
          %p520 = pneg %p59
        $region70: #{tpu_custom_call.1} parent=67 // pred_check_branch
          %522 = sbr.rel (%p520) target = $region72
        $region71: #{tpu_custom_call.1} parent=67 // pred_region
          %524 = dma.done [#allocation4], 256
        $region72: #{tpu_custom_call.1} parent=67 // pred_fallthru
          _
        // Predicated region
        $region73: #{tpu_custom_call.1} parent=67 // pred_check
          %p525 = pneg %p85
        $region74: #{tpu_custom_call.1} parent=67 // pred_check_branch
          %527 = sbr.rel (%p525) target = $region76
        $region75: #{tpu_custom_call.1} parent=67 // pred_region
          %529 = dma.done [#allocation7], 32
        $region76: #{tpu_custom_call.1} parent=67 // pred_fallthru
          _
        %s530 = sand.u32 %s26, 1
        %s531 = scalar_lea.sflag [#allocation4], %s530
        %s532 = sand.u32 %s124, 1
        %s533 = scalar_lea.vmem [#allocation8], %s532
        // Predicated region
        $region77: #{tpu_custom_call.1} parent=67 // pred_check
          %p534 = pneg %p137
        $region78: #{tpu_custom_call.1} parent=67 // pred_check_branch
          %536 = sbr.rel (%p534) target = $region80
        $region79: #{tpu_custom_call.1} parent=67 // pred_region
          %538 = dma.done %s531, 16
        $region80: #{tpu_custom_call.1} parent=67 // pred_fallthru
          _
        %s539 = sand.u32 %s26, 1
        %s540 = scalar_lea.sflag [#allocation4], %s539
        %s541 = sand.u32 %s332, 1
        %s542 = scalar_lea.vmem [#allocation9], %s541
        // Predicated region
        $region81: #{tpu_custom_call.1} parent=67 // pred_check
          %p543 = pneg %p345
        $region82: #{tpu_custom_call.1} parent=67 // pred_check_branch
          %545 = sbr.rel (%p543) target = $region84
        $region83: #{tpu_custom_call.1} parent=67 // pred_region
          %547 = dma.done %s540, 16
        $region84: #{tpu_custom_call.1} parent=67 // pred_fallthru
          _
        %p548 = pneg %p59
        %p549 = pneg %p56
        %p550 = pneg %p85
        %p551 = pneg %p82
        %p552 = scmp.lt.s32.totalorder %s31, 1
        %s553 = scalar_select %p552, %s31, 1
        %s554 = smul.addr %s553, 4
        %s555 = smul.addr %s554, 4
        %s556 = scalar_lea.vmem %s2, %s555
        %p557 = pneg %p111
        %p558 = pneg %p108
        %s559 = sand.u32 %s26, 1
        %s560 = scalar_lea.sflag [#allocation4], %s559
        %s561 = sand.u32 %s124, 1
        %s562 = scalar_lea.vmem [#allocation8], %s561
        %p563 = pneg %p137
        %p564 = pneg %p134
        %p565 = scmp.lt.s32.totalorder %s31, 1
        %s566 = scalar_select %p565, %s31, 1
        %s567 = smul.addr %s566, 4
        %s568 = smul.addr %s567, 4
        %s569 = scalar_lea.vmem %s4, %s568
        %p570 = pneg %p163
        %p571 = pneg %p160
        %p572 = scmp.lt.s32.totalorder %s31, 1
        %s573 = scalar_select %p572, %s31, 1
        %s574 = scalar_lea.vmem %s5, %s573
        %p575 = pneg %p189
        %p576 = pneg %p186
        %p577 = scmp.lt.s32.totalorder %s31, 1
        %s578 = scalar_select %p577, %s31, 1
        %s579 = smul.addr %s578, 4
        %s580 = smul.addr %s579, 4
        %s581 = scalar_lea.vmem %s6, %s580
        %p582 = pneg %p215
        %p583 = pneg %p212
        %p584 = scmp.lt.s32.totalorder %s31, 1
        %s585 = scalar_select %p584, %s31, 1
        %s586 = scalar_lea.vmem %s7, %s585
        %p587 = pneg %p241
        %p588 = pneg %p238
        %p589 = scmp.lt.s32.totalorder %s31, 1
        %s590 = scalar_select %p589, %s31, 1
        %s591 = smul.addr %s590, 8
        %s592 = smul.addr %s591, 4
        %s593 = scalar_lea.vmem %s8, %s592
        %p594 = pneg %p267
        %p595 = pneg %p264
        %p596 = scmp.lt.s32.totalorder %s31, 1
        %s597 = scalar_select %p596, %s31, 1
        %s598 = scalar_lea.vmem %s9, %s597
        %p599 = pneg %p293
        %p600 = pneg %p290
        %p601 = scmp.lt.s32.totalorder %s31, 1
        %s602 = scalar_select %p601, %s31, 1
        %s603 = scalar_lea.vmem %s10, %s602
        %p604 = pneg %p319
        %p605 = pneg %p316
        %s606 = sand.u32 %s26, 1
        %s607 = scalar_lea.sflag [#allocation4], %s606
        %s608 = sand.u32 %s332, 1
        %s609 = scalar_lea.vmem [#allocation9], %s608
        %p610 = pneg %p345
        %p611 = pneg %p342
        %p612 = pneg %p371
        %p613 = pneg %p368
        %s614 = smul.u32 2, %s30
        %s615 = smul.u32 2, %s30
        %p616 = scmp.lt.s32.totalorder %s31, 1
        %s617 = scalar_select %p616, %s31, 1
        %s618 = smul.addr %s617, 4
        %s619 = smul.addr %s618, 4
        %s620 = scalar_lea.vmem %s2, %s619
        %p621 = scmp.lt.s32.totalorder %s31, 1
        %s622 = scalar_select %p621, %s31, 1
        %s623 = smul.addr %s622, 4
        %s624 = smul.addr %s623, 4
        %s625 = scalar_lea.vmem %s4, %s624
        %p626 = scmp.lt.s32.totalorder %s31, 1
        %s627 = scalar_select %p626, %s31, 1
        %s628 = scalar_lea.vmem %s5, %s627
        %p629 = scmp.lt.s32.totalorder %s31, 1
        %s630 = scalar_select %p629, %s31, 1
        %s631 = smul.addr %s630, 4
        %s632 = smul.addr %s631, 4
        %s633 = scalar_lea.vmem %s6, %s632
        %p634 = scmp.lt.s32.totalorder %s31, 1
        %s635 = scalar_select %p634, %s31, 1
        %s636 = scalar_lea.vmem %s7, %s635
        %p637 = scmp.lt.s32.totalorder %s31, 1
        %s638 = scalar_select %p637, %s31, 1
        %s639 = smul.addr %s638, 8
        %s640 = smul.addr %s639, 4
        %s641 = scalar_lea.vmem %s8, %s640
        %p642 = scmp.lt.s32.totalorder %s31, 1
        %s643 = scalar_select %p642, %s31, 1
        %s644 = scalar_lea.vmem %s9, %s643
        %p645 = scmp.lt.s32.totalorder %s31, 1
        %s646 = scalar_select %p645, %s31, 1
        %s647 = scalar_lea.vmem %s10, %s646
        %s648 = smul.u32 2, %s30
        %p650 = scmp.eq.s32.totalorder %s31, 0
        // Predicated region
        $region85: #{tpu_custom_call.1} parent=67 // pred_check
          %p651 = pneg %p650
        $region86: #{tpu_custom_call.1} parent=67 // pred_check_branch
          %653 = sbr.rel (%p651) target = $region88
        $region87: #{tpu_custom_call.1} parent=67 // pred_region
          %v654 = vld [vmem:[#allocation3] sm:$0xff]
          %v655 = vld [vmem:[#allocation3 + $0x8] sm:$0xff]
          %vm656 = vcmask 261120
          %657 = vst.msk [vmem:[#allocation2] sm:$0xff] %vm656, %v654
          %658 = vst.msk [vmem:[#allocation2 + $0x8] sm:$0xff] %vm656, %v655
        $region88: #{tpu_custom_call.1} parent=67 // pred_fallthru
          _
        %v659 = vld [vmem:[#allocation2] sm:$0xff]
        %v660 = vld [vmem:[#allocation2 + $0x8] sm:$0xff]
        %v661 = vld [vmem:[#allocation6] sm:$0x1]
        %v662 = vld [vmem:[#allocation6 + $0x1] sm:$0x1]
        %v663 = vld [vmem:[%s620] sm:$0xf]
        %v664 = vld [vmem:[%s620 + $0x4] sm:$0xf]
        %v665 = vld [vmem:[%s620 + $0x8] sm:$0xf]
        %v666 = vld [vmem:[%s620 + $0xc] sm:$0xf]
        %v667 = vpack.c.bf16 %v660, %v659
        %v668 = vld [vmem:[%s533] sm:$0x1]
        %v670 = vperm.slane %v668, 0
        %v676 = vunpack.c.l.b16 %v663
        %v677 = vunpack.c.l.b16 %v664
        %v678 = vunpack.c.l.b16 %v665
        %v679 = vunpack.c.l.b16 %v666
        %v680 = vpack.c.b16 %v677, %v676
        %v681 = vpack.c.b16 %v679, %v678
        %vm684 = vcmask 261120
        %v686 = vsel %vm684, %v667, 0
        %688 = vmatpush.bf16.msra.mxu0 0
        %689 = vmatpush.bf16.msra.mxu0 0
        %690 = vmatpush.bf16.msra.mxu0 0
        %691 = vmatpush.bf16.msra.mxu0 0
        %692 = vmatpush.bf16.msra.mxu0 0
        %693 = vmatpush.bf16.msra.mxu0 0
        %694 = vmatpush.bf16.msra.mxu0 %v681
        %695 = vmatpush.bf16.msra.mxu0 %v680
        %696 = vmatmul.bf16.gmra.mxu0 %v686
        %v697 = vpop.f32.mrf.mxu0
        %v698 = vadd.f32 %v670, %v697
        %v699 = vpop.f32.mrf.mxu0
        %v700 = vadd.f32 %v670, %v699
        %701 = vdwg.mxu0
        %v702 = vld [vmem:[%s625] sm:$0xf]
        %v703 = vld [vmem:[%s625 + $0x4] sm:$0xf]
        %v704 = vld [vmem:[%s625 + $0x8] sm:$0xf]
        %v705 = vld [vmem:[%s625 + $0xc] sm:$0xf]
        %v706 = vpack.c.bf16 %v698, %v698
        %v707 = vpack.c.bf16 %v700, %v700
        %v709 = vunpack.c.l.b16 %v706
        %v710 = vpack.c.b16 %v709, %v709
        %711 = vrot.lane.b32.xlu0 %v710, 96
        %v712 = vpop.permute.xlu0 %711
        %vm713 = vcmask 64512
        %v715 = vsel %vm713, %v706, 0
        %v718 = vsel %vm713, %v712, 0
        %720 = vmatpush.bf16.xpose.msra.mxu0 0
        %721 = vmatpush.bf16.xpose.msra.mxu0 0
        %722 = vmatpush.bf16.xpose.msra.mxu0 0
        %723 = vmatpush.bf16.xpose.msra.mxu0 0
        %724 = vmatpush.bf16.xpose.msra.mxu0 0
        %725 = vmatpush.bf16.xpose.msra.mxu0 0
        %726 = vmatpush.bf16.xpose.msra.mxu0 0
        %727 = vmatpush.bf16.xpose.msra.mxu0 %v718
        %728 = vmatmul.bf16.gmra.mxu0 %v715
        %v729 = vpop.f32.mrf.mxu0
        %v730 = vadd.f32 0.0, %v729
        %v731 = vpop.f32.mrf.mxu0
        %732 = vdwg.mxu0
        %v734 = vunpack.c.l.b16 %v707
        %v735 = vpack.c.b16 %v734, %v734
        %736 = vrot.lane.b32.xlu0 %v735, 96
        %v737 = vpop.permute.xlu0 %736
        %v739 = vsel %vm713, %v707, 0
        %v742 = vsel %vm713, %v737, 0
        %744 = vmatpush.bf16.xpose.msra.mxu0 0
        %745 = vmatpush.bf16.xpose.msra.mxu0 0
        %746 = vmatpush.bf16.xpose.msra.mxu0 0
        %747 = vmatpush.bf16.xpose.msra.mxu0 0
        %748 = vmatpush.bf16.xpose.msra.mxu0 0
        %749 = vmatpush.bf16.xpose.msra.mxu0 0
        %750 = vmatpush.bf16.xpose.msra.mxu0 0
        %751 = vmatpush.bf16.xpose.msra.mxu0 %v742
        %752 = vmatmul.bf16.gmra.mxu0 %v739
        %v753 = vpop.f32.mrf.mxu0
        %v754 = vadd.f32 0.0, %v753
        %v755 = vpop.f32.mrf.mxu0
        %756 = vdwg.mxu0
        %v757 = vmul.f32 %v730, 0.35355338
        %v758 = vmul.f32 %v754, 0.35355338
        %v761 = vperm.slane %v661, 0
        %v762 = vperm.slane %v662, 0
        %v765 = vadd.f32 %v757, %v761
        %v766 = vadd.f32 %v758, %v762
        %v767 = vsel %vm713, %v765, -inf
        %768 = vmax.xlane.f32.xlu0 %v767
        %v769 = vpop.xlane.xlu0 %768
        %v770 = vsel %vm713, %v766, -inf
        %771 = vmax.xlane.f32.xlu0 %v770
        %v772 = vpop.xlane.xlu0 %771
        %v773 = vsub.f32 %v765, %v769
        %v774 = vsub.f32 %v766, %v772
        %v775 = vmul.f32 %v773, 1.442695
        %v776 = vpow.pop %v775
        %v777 = vmul.f32 %v774, 1.442695
        %v778 = vpow.pop %v777
        %v779 = vsel %vm713, %v776, 0.0
        %780 = vadd.xlane.f32.xlu0 %v779
        %v781 = vpop.xlane.xlu0 %780
        %v782 = vsel %vm713, %v778, 0.0
        %783 = vadd.xlane.f32.xlu0 %v782
        %v784 = vpop.xlane.xlu0 %783
        %v785 = vrcp.pop %v781
        %v786 = vrcp.pop %v784
        %v787 = vmul.f32 %v776, %v785
        %v788 = vmul.f32 %v778, %v786
        %v789 = vpack.c.bf16 %v787, %v787
        %v790 = vpack.c.bf16 %v788, %v788
        %791 = vrot.lane.b32.xlu0 %v710, 64
        %v792 = vpop.permute.xlu0 %791
        %v794 = vsel %vm713, %v789, 0
        %vm796 = vcmask 1043456
        %v798 = vsel %vm796, %v792, 0
        %800 = vmatpush.bf16.msra.mxu0 0
        %801 = vmatpush.bf16.msra.mxu0 0
        %802 = vmatpush.bf16.msra.mxu0 0
        %803 = vmatpush.bf16.msra.mxu0 0
        %804 = vmatpush.bf16.msra.mxu0 0
        %805 = vmatpush.bf16.msra.mxu0 0
        %806 = vmatpush.bf16.msra.mxu0 0
        %807 = vmatpush.bf16.msra.mxu0 %v798
        %808 = vmatmul.bf16.gmra.mxu0 %v794
        %v809 = vpop.f32.mrf.mxu0
        %v810 = vadd.f32 0.0, %v809
        %v811 = vpop.f32.mrf.mxu0
        %812 = vdwg.mxu0
        %813 = vrot.lane.b32.xlu0 %v735, 64
        %v814 = vpop.permute.xlu0 %813
        %v816 = vsel %vm713, %v790, 0
        %v819 = vsel %vm796, %v814, 0
        %821 = vmatpush.bf16.msra.mxu0 0
        %822 = vmatpush.bf16.msra.mxu0 0
        %823 = vmatpush.bf16.msra.mxu0 0
        %824 = vmatpush.bf16.msra.mxu0 0
        %825 = vmatpush.bf16.msra.mxu0 0
        %826 = vmatpush.bf16.msra.mxu0 0
        %827 = vmatpush.bf16.msra.mxu0 0
        %828 = vmatpush.bf16.msra.mxu0 %v819
        %829 = vmatmul.bf16.gmra.mxu0 %v816
        %v830 = vpop.f32.mrf.mxu0
        %v831 = vadd.f32 0.0, %v830
        %v832 = vpop.f32.mrf.mxu0
        %833 = vdwg.mxu0
        %v834 = vpack.c.bf16 %v831, %v810
        %835 = vrot.lane.b32.xlu0 %v710, 120
        %v836 = vpop.permute.xlu0 %835
        %837 = vrot.lane.b32.xlu0 %v710, 88
        %v838 = vpop.permute.xlu0 %837
        %v840 = vsel %vm713, %v836, 0
        %v843 = vsel %vm713, %v838, 0
        %845 = vmatpush.bf16.xpose.msra.mxu0 0
        %846 = vmatpush.bf16.xpose.msra.mxu0 0
        %847 = vmatpush.bf16.xpose.msra.mxu0 0
        %848 = vmatpush.bf16.xpose.msra.mxu0 0
        %849 = vmatpush.bf16.xpose.msra.mxu0 0
        %850 = vmatpush.bf16.xpose.msra.mxu0 0
        %851 = vmatpush.bf16.xpose.msra.mxu0 0
        %852 = vmatpush.bf16.xpose.msra.mxu0 %v843
        %853 = vmatmul.bf16.gmra.mxu0 %v840
        %v854 = vpop.f32.mrf.mxu0
        %v855 = vadd.f32 0.0, %v854
        %v856 = vpop.f32.mrf.mxu0
        %857 = vdwg.mxu0
        %858 = vrot.lane.b32.xlu0 %v735, 120
        %v859 = vpop.permute.xlu0 %858
        %860 = vrot.lane.b32.xlu0 %v735, 88
        %v861 = vpop.permute.xlu0 %860
        %v863 = vsel %vm713, %v859, 0
        %v866 = vsel %vm713, %v861, 0
        %868 = vmatpush.bf16.xpose.msra.mxu0 0
        %869 = vmatpush.bf16.xpose.msra.mxu0 0
        %870 = vmatpush.bf16.xpose.msra.mxu0 0
        %871 = vmatpush.bf16.xpose.msra.mxu0 0
        %872 = vmatpush.bf16.xpose.msra.mxu0 0
        %873 = vmatpush.bf16.xpose.msra.mxu0 0
        %874 = vmatpush.bf16.xpose.msra.mxu0 0
        %875 = vmatpush.bf16.xpose.msra.mxu0 %v866
        %876 = vmatmul.bf16.gmra.mxu0 %v863
        %v877 = vpop.f32.mrf.mxu0
        %v878 = vadd.f32 0.0, %v877
        %v879 = vpop.f32.mrf.mxu0
        %880 = vdwg.mxu0
        %v881 = vmul.f32 %v855, 0.35355338
        %v882 = vmul.f32 %v878, 0.35355338
        %v883 = vadd.f32 %v881, %v761
        %v884 = vadd.f32 %v882, %v762
        %v885 = vsel %vm713, %v883, -inf
        %886 = vmax.xlane.f32.xlu0 %v885
        %v887 = vpop.xlane.xlu0 %886
        %v888 = vsel %vm713, %v884, -inf
        %889 = vmax.xlane.f32.xlu0 %v888
        %v890 = vpop.xlane.xlu0 %889
        %v891 = vsub.f32 %v883, %v887
        %v892 = vsub.f32 %v884, %v890
        %v893 = vmul.f32 %v891, 1.442695
        %v894 = vpow.pop %v893
        %v895 = vmul.f32 %v892, 1.442695
        %v896 = vpow.pop %v895
        %v897 = vsel %vm713, %v894, 0.0
        %898 = vadd.xlane.f32.xlu0 %v897
        %v899 = vpop.xlane.xlu0 %898
        %v900 = vsel %vm713, %v896, 0.0
        %901 = vadd.xlane.f32.xlu0 %v900
        %v902 = vpop.xlane.xlu0 %901
        %v903 = vrcp.pop %v899
        %v904 = vrcp.pop %v902
        %v905 = vmul.f32 %v894, %v903
        %v906 = vmul.f32 %v896, %v904
        %v907 = vpack.c.bf16 %v905, %v905
        %v908 = vpack.c.bf16 %v906, %v906
        %909 = vrot.lane.b32.xlu0 %v710, 56
        %v910 = vpop.permute.xlu0 %909
        %v912 = vsel %vm713, %v907, 0
        %v915 = vsel %vm796, %v910, 0
        %917 = vmatpush.bf16.msra.mxu0 0
        %918 = vmatpush.bf16.msra.mxu0 0
        %919 = vmatpush.bf16.msra.mxu0 0
        %920 = vmatpush.bf16.msra.mxu0 0
        %921 = vmatpush.bf16.msra.mxu0 0
        %922 = vmatpush.bf16.msra.mxu0 0
        %923 = vmatpush.bf16.msra.mxu0 0
        %924 = vmatpush.bf16.msra.mxu0 %v915
        %925 = vmatmul.bf16.gmra.mxu0 %v912
        %v926 = vpop.f32.mrf.mxu0
        %v927 = vadd.f32 0.0, %v926
        %v928 = vpop.f32.mrf.mxu0
        %929 = vdwg.mxu0
        %930 = vrot.lane.b32.xlu0 %v735, 56
        %v931 = vpop.permute.xlu0 %930
        %v933 = vsel %vm713, %v908, 0
        %v936 = vsel %vm796, %v931, 0
        %938 = vmatpush.bf16.msra.mxu0 0
        %939 = vmatpush.bf16.msra.mxu0 0
        %940 = vmatpush.bf16.msra.mxu0 0
        %941 = vmatpush.bf16.msra.mxu0 0
        %942 = vmatpush.bf16.msra.mxu0 0
        %943 = vmatpush.bf16.msra.mxu0 0
        %944 = vmatpush.bf16.msra.mxu0 0
        %945 = vmatpush.bf16.msra.mxu0 %v936
        %946 = vmatmul.bf16.gmra.mxu0 %v933
        %v947 = vpop.f32.mrf.mxu0
        %v948 = vadd.f32 0.0, %v947
        %v949 = vpop.f32.mrf.mxu0
        %950 = vdwg.mxu0
        %v951 = vpack.c.bf16 %v948, %v927
        %v953 = vsel %vm713, %v951, 0
        %v956 = vsel %vm796, %v703, 0
        %958 = vmatpush.bf16.msra.mxu0 0
        %959 = vmatpush.bf16.msra.mxu0 0
        %960 = vmatpush.bf16.msra.mxu0 0
        %961 = vmatpush.bf16.msra.mxu0 0
        %962 = vmatpush.bf16.msra.mxu0 0
        %963 = vmatpush.bf16.msra.mxu0 0
        %964 = vmatpush.bf16.msra.mxu0 0
        %965 = vmatpush.bf16.msra.mxu0 %v956
        %966 = vmatmul.bf16.gmra.mxu0 %v953
        %v967 = vpop.f32.mrf.mxu0
        %v968 = vadd.f32 0.0, %v967
        %v969 = vpop.f32.mrf.mxu0
        %v970 = vadd.f32 0.0, %v969
        %971 = vdwg.mxu0
        %v973 = vsel %vm713, %v834, 0
        %v976 = vsel %vm796, %v702, 0
        %978 = vmatpush.bf16.msra.mxu0 0
        %979 = vmatpush.bf16.msra.mxu0 0
        %980 = vmatpush.bf16.msra.mxu0 0
        %981 = vmatpush.bf16.msra.mxu0 0
        %982 = vmatpush.bf16.msra.mxu0 0
        %983 = vmatpush.bf16.msra.mxu0 0
        %984 = vmatpush.bf16.msra.mxu0 0
        %985 = vmatpush.bf16.msra.mxu0 %v976
        %986 = vmatmul.bf16.gmra.mxu0 %v973
        %v987 = vpop.f32.mrf.mxu0
        %v988 = vadd.f32 %v968, %v987
        %v989 = vpop.f32.mrf.mxu0
        %v990 = vadd.f32 %v970, %v989
        %991 = vdwg.mxu0
        %992 = vrot.lane.b32.xlu0 %v710, 112
        %v993 = vpop.permute.xlu0 %992
        %994 = vrot.lane.b32.xlu0 %v710, 80
        %v995 = vpop.permute.xlu0 %994
        %v997 = vsel %vm713, %v993, 0
        %v1000 = vsel %vm713, %v995, 0
        %1002 = vmatpush.bf16.xpose.msra.mxu0 0
        %1003 = vmatpush.bf16.xpose.msra.mxu0 0
        %1004 = vmatpush.bf16.xpose.msra.mxu0 0
        %1005 = vmatpush.bf16.xpose.msra.mxu0 0
        %1006 = vmatpush.bf16.xpose.msra.mxu0 0
        %1007 = vmatpush.bf16.xpose.msra.mxu0 0
        %1008 = vmatpush.bf16.xpose.msra.mxu0 0
        %1009 = vmatpush.bf16.xpose.msra.mxu0 %v1000
        %1010 = vmatmul.bf16.gmra.mxu0 %v997
        %v1011 = vpop.f32.mrf.mxu0
        %v1012 = vadd.f32 0.0, %v1011
        %v1013 = vpop.f32.mrf.mxu0
        %1014 = vdwg.mxu0
        %1015 = vrot.lane.b32.xlu0 %v735, 112
        %v1016 = vpop.permute.xlu0 %1015
        %1017 = vrot.lane.b32.xlu0 %v735, 80
        %v1018 = vpop.permute.xlu0 %1017
        %v1020 = vsel %vm713, %v1016, 0
        %v1023 = vsel %vm713, %v1018, 0
        %1025 = vmatpush.bf16.xpose.msra.mxu0 0
        %1026 = vmatpush.bf16.xpose.msra.mxu0 0
        %1027 = vmatpush.bf16.xpose.msra.mxu0 0
        %1028 = vmatpush.bf16.xpose.msra.mxu0 0
        %1029 = vmatpush.bf16.xpose.msra.mxu0 0
        %1030 = vmatpush.bf16.xpose.msra.mxu0 0
        %1031 = vmatpush.bf16.xpose.msra.mxu0 0
        %1032 = vmatpush.bf16.xpose.msra.mxu0 %v1023
        %1033 = vmatmul.bf16.gmra.mxu0 %v1020
        %v1034 = vpop.f32.mrf.mxu0
        %v1035 = vadd.f32 0.0, %v1034
        %v1036 = vpop.f32.mrf.mxu0
        %1037 = vdwg.mxu0
        %v1038 = vmul.f32 %v1012, 0.35355338
        %v1039 = vmul.f32 %v1035, 0.35355338
        %v1040 = vadd.f32 %v1038, %v761
        %v1041 = vadd.f32 %v1039, %v762
        %v1042 = vsel %vm713, %v1040, -inf
        %1043 = vmax.xlane.f32.xlu0 %v1042
        %v1044 = vpop.xlane.xlu0 %1043
        %v1045 = vsel %vm713, %v1041, -inf
        %1046 = vmax.xlane.f32.xlu0 %v1045
        %v1047 = vpop.xlane.xlu0 %1046
        %v1048 = vsub.f32 %v1040, %v1044
        %v1049 = vsub.f32 %v1041, %v1047
        %v1050 = vmul.f32 %v1048, 1.442695
        %v1051 = vpow.pop %v1050
        %v1052 = vmul.f32 %v1049, 1.442695
        %v1053 = vpow.pop %v1052
        %v1054 = vsel %vm713, %v1051, 0.0
        %1055 = vadd.xlane.f32.xlu0 %v1054
        %v1056 = vpop.xlane.xlu0 %1055
        %v1057 = vsel %vm713, %v1053, 0.0
        %1058 = vadd.xlane.f32.xlu0 %v1057
        %v1059 = vpop.xlane.xlu0 %1058
        %v1060 = vrcp.pop %v1056
        %v1061 = vrcp.pop %v1059
        %v1062 = vmul.f32 %v1051, %v1060
        %v1063 = vmul.f32 %v1053, %v1061
        %v1064 = vpack.c.bf16 %v1062, %v1062
        %v1065 = vpack.c.bf16 %v1063, %v1063
        %1066 = vrot.lane.b32.xlu0 %v710, 48
        %v1067 = vpop.permute.xlu0 %1066
        %v1069 = vsel %vm713, %v1064, 0
        %v1072 = vsel %vm796, %v1067, 0
        %1074 = vmatpush.bf16.msra.mxu0 0
        %1075 = vmatpush.bf16.msra.mxu0 0
        %1076 = vmatpush.bf16.msra.mxu0 0
        %1077 = vmatpush.bf16.msra.mxu0 0
        %1078 = vmatpush.bf16.msra.mxu0 0
        %1079 = vmatpush.bf16.msra.mxu0 0
        %1080 = vmatpush.bf16.msra.mxu0 0
        %1081 = vmatpush.bf16.msra.mxu0 %v1072
        %1082 = vmatmul.bf16.gmra.mxu0 %v1069
        %v1083 = vpop.f32.mrf.mxu0
        %v1084 = vadd.f32 0.0, %v1083
        %v1085 = vpop.f32.mrf.mxu0
        %1086 = vdwg.mxu0
        %1087 = vrot.lane.b32.xlu0 %v735, 48
        %v1088 = vpop.permute.xlu0 %1087
        %v1090 = vsel %vm713, %v1065, 0
        %v1093 = vsel %vm796, %v1088, 0
        %1095 = vmatpush.bf16.msra.mxu0 0
        %1096 = vmatpush.bf16.msra.mxu0 0
        %1097 = vmatpush.bf16.msra.mxu0 0
        %1098 = vmatpush.bf16.msra.mxu0 0
        %1099 = vmatpush.bf16.msra.mxu0 0
        %1100 = vmatpush.bf16.msra.mxu0 0
        %1101 = vmatpush.bf16.msra.mxu0 0
        %1102 = vmatpush.bf16.msra.mxu0 %v1093
        %1103 = vmatmul.bf16.gmra.mxu0 %v1090
        %v1104 = vpop.f32.mrf.mxu0
        %v1105 = vadd.f32 0.0, %v1104
        %v1106 = vpop.f32.mrf.mxu0
        %1107 = vdwg.mxu0
        %v1108 = vpack.c.bf16 %v1105, %v1084
        %v1110 = vsel %vm713, %v1108, 0
        %v1113 = vsel %vm796, %v704, 0
        %1115 = vmatpush.bf16.msra.mxu0 0
        %1116 = vmatpush.bf16.msra.mxu0 0
        %1117 = vmatpush.bf16.msra.mxu0 0
        %1118 = vmatpush.bf16.msra.mxu0 0
        %1119 = vmatpush.bf16.msra.mxu0 0
        %1120 = vmatpush.bf16.msra.mxu0 0
        %1121 = vmatpush.bf16.msra.mxu0 0
        %1122 = vmatpush.bf16.msra.mxu0 %v1113
        %1123 = vmatmul.bf16.gmra.mxu0 %v1110
        %v1124 = vpop.f32.mrf.mxu0
        %v1125 = vadd.f32 0.0, %v1124
        %v1126 = vpop.f32.mrf.mxu0
        %v1127 = vadd.f32 0.0, %v1126
        %1128 = vdwg.mxu0
        %v1129 = vadd.f32 %v988, %v1125
        %v1130 = vadd.f32 %v990, %v1127
        %1131 = vrot.lane.b32.xlu0 %v710, 104
        %v1132 = vpop.permute.xlu0 %1131
        %1133 = vrot.lane.b32.xlu0 %v710, 72
        %v1134 = vpop.permute.xlu0 %1133
        %v1136 = vsel %vm713, %v1132, 0
        %v1139 = vsel %vm713, %v1134, 0
        %1141 = vmatpush.bf16.xpose.msra.mxu0 0
        %1142 = vmatpush.bf16.xpose.msra.mxu0 0
        %1143 = vmatpush.bf16.xpose.msra.mxu0 0
        %1144 = vmatpush.bf16.xpose.msra.mxu0 0
        %1145 = vmatpush.bf16.xpose.msra.mxu0 0
        %1146 = vmatpush.bf16.xpose.msra.mxu0 0
        %1147 = vmatpush.bf16.xpose.msra.mxu0 0
        %1148 = vmatpush.bf16.xpose.msra.mxu0 %v1139
        %1149 = vmatmul.bf16.gmra.mxu0 %v1136
        %v1150 = vpop.f32.mrf.mxu0
        %v1151 = vadd.f32 0.0, %v1150
        %v1152 = vpop.f32.mrf.mxu0
        %1153 = vdwg.mxu0
        %1154 = vrot.lane.b32.xlu0 %v735, 104
        %v1155 = vpop.permute.xlu0 %1154
        %1156 = vrot.lane.b32.xlu0 %v735, 72
        %v1157 = vpop.permute.xlu0 %1156
        %v1159 = vsel %vm713, %v1155, 0
        %v1162 = vsel %vm713, %v1157, 0
        %1164 = vmatpush.bf16.xpose.msra.mxu0 0
        %1165 = vmatpush.bf16.xpose.msra.mxu0 0
        %1166 = vmatpush.bf16.xpose.msra.mxu0 0
        %1167 = vmatpush.bf16.xpose.msra.mxu0 0
        %1168 = vmatpush.bf16.xpose.msra.mxu0 0
        %1169 = vmatpush.bf16.xpose.msra.mxu0 0
        %1170 = vmatpush.bf16.xpose.msra.mxu0 0
        %1171 = vmatpush.bf16.xpose.msra.mxu0 %v1162
        %1172 = vmatmul.bf16.gmra.mxu0 %v1159
        %v1173 = vpop.f32.mrf.mxu0
        %v1174 = vadd.f32 0.0, %v1173
        %v1175 = vpop.f32.mrf.mxu0
        %1176 = vdwg.mxu0
        %v1177 = vmul.f32 %v1151, 0.35355338
        %v1178 = vmul.f32 %v1174, 0.35355338
        %v1179 = vadd.f32 %v1177, %v761
        %v1180 = vadd.f32 %v1178, %v762
        %v1181 = vsel %vm713, %v1179, -inf
        %1182 = vmax.xlane.f32.xlu0 %v1181
        %v1183 = vpop.xlane.xlu0 %1182
        %v1184 = vsel %vm713, %v1180, -inf
        %1185 = vmax.xlane.f32.xlu0 %v1184
        %v1186 = vpop.xlane.xlu0 %1185
        %v1187 = vsub.f32 %v1179, %v1183
        %v1188 = vsub.f32 %v1180, %v1186
        %v1189 = vmul.f32 %v1187, 1.442695
        %v1190 = vpow.pop %v1189
        %v1191 = vmul.f32 %v1188, 1.442695
        %v1192 = vpow.pop %v1191
        %v1193 = vsel %vm713, %v1190, 0.0
        %1194 = vadd.xlane.f32.xlu0 %v1193
        %v1195 = vpop.xlane.xlu0 %1194
        %v1196 = vsel %vm713, %v1192, 0.0
        %1197 = vadd.xlane.f32.xlu0 %v1196
        %v1198 = vpop.xlane.xlu0 %1197
        %v1199 = vrcp.pop %v1195
        %v1200 = vrcp.pop %v1198
        %v1201 = vmul.f32 %v1190, %v1199
        %v1202 = vmul.f32 %v1192, %v1200
        %v1203 = vpack.c.bf16 %v1201, %v1201
        %v1204 = vpack.c.bf16 %v1202, %v1202
        %1205 = vrot.lane.b32.xlu0 %v710, 40
        %v1206 = vpop.permute.xlu0 %1205
        %v1208 = vsel %vm713, %v1203, 0
        %v1211 = vsel %vm796, %v1206, 0
        %1213 = vmatpush.bf16.msra.mxu0 0
        %1214 = vmatpush.bf16.msra.mxu0 0
        %1215 = vmatpush.bf16.msra.mxu0 0
        %1216 = vmatpush.bf16.msra.mxu0 0
        %1217 = vmatpush.bf16.msra.mxu0 0
        %1218 = vmatpush.bf16.msra.mxu0 0
        %1219 = vmatpush.bf16.msra.mxu0 0
        %1220 = vmatpush.bf16.msra.mxu0 %v1211
        %1221 = vmatmul.bf16.gmra.mxu0 %v1208
        %v1222 = vpop.f32.mrf.mxu0
        %v1223 = vadd.f32 0.0, %v1222
        %v1224 = vpop.f32.mrf.mxu0
        %1225 = vdwg.mxu0
        %1226 = vrot.lane.b32.xlu0 %v735, 40
        %v1227 = vpop.permute.xlu0 %1226
        %v1229 = vsel %vm713, %v1204, 0
        %v1232 = vsel %vm796, %v1227, 0
        %1234 = vmatpush.bf16.msra.mxu0 0
        %1235 = vmatpush.bf16.msra.mxu0 0
        %1236 = vmatpush.bf16.msra.mxu0 0
        %1237 = vmatpush.bf16.msra.mxu0 0
        %1238 = vmatpush.bf16.msra.mxu0 0
        %1239 = vmatpush.bf16.msra.mxu0 0
        %1240 = vmatpush.bf16.msra.mxu0 0
        %1241 = vmatpush.bf16.msra.mxu0 %v1232
        %1242 = vmatmul.bf16.gmra.mxu0 %v1229
        %v1243 = vpop.f32.mrf.mxu0
        %v1244 = vadd.f32 0.0, %v1243
        %v1245 = vpop.f32.mrf.mxu0
        %1246 = vdwg.mxu0
        %v1247 = vpack.c.bf16 %v1244, %v1223
        %v1249 = vsel %vm713, %v1247, 0
        %v1252 = vsel %vm796, %v705, 0
        %1254 = vmatpush.bf16.msra.mxu0 0
        %1255 = vmatpush.bf16.msra.mxu0 0
        %1256 = vmatpush.bf16.msra.mxu0 0
        %1257 = vmatpush.bf16.msra.mxu0 0
        %1258 = vmatpush.bf16.msra.mxu0 0
        %1259 = vmatpush.bf16.msra.mxu0 0
        %1260 = vmatpush.bf16.msra.mxu0 0
        %1261 = vmatpush.bf16.msra.mxu0 %v1252
        %1262 = vmatmul.bf16.gmra.mxu0 %v1249
        %v1263 = vpop.f32.mrf.mxu0
        %v1264 = vadd.f32 0.0, %v1263
        %v1265 = vpop.f32.mrf.mxu0
        %v1266 = vadd.f32 0.0, %v1265
        %1267 = vdwg.mxu0
        %v1268 = vadd.f32 %v1129, %v1264
        %v1269 = vadd.f32 %v1130, %v1266
        %v1270 = vld [vmem:[%s628] sm:$0x1]
        %v1272 = vperm.slane %v1270, 0
        %v1274 = vadd.f32 %v1268, %v1272
        %v1275 = vadd.f32 %v1269, %v1272
        %v1276 = vld [vmem:[%s647] sm:$0x1]
        %v1277 = vld [vmem:[%s542] sm:$0x1]
        %v1278 = vadd.f32 %v659, %v1274
        %v1279 = vadd.f32 %v660, %v1275
        %v1280 = vsel %vm684, %v1278, 0.0
        %1281 = vadd.xlane.f32.xlu0 %v1280
        %v1282 = vpop.xlane.xlu0 %1281
        %v1283 = vsel %vm684, %v1279, 0.0
        %1284 = vadd.xlane.f32.xlu0 %v1283
        %v1285 = vpop.xlane.xlu0 %1284
        %v1286 = vrcp.pop 32.0
        %v1287 = vmul.f32 32.0, %v1286
        %v1288 = vsub.f32 1.0, %v1287
        %v1289 = vmul.f32 %v1286, %v1288
        %v1290 = vadd.f32 %v1286, %v1289
        %vm1291 = vweird.f32 %v1286
        %v1292 = vsel %vm1291, %v1286, %v1290
        %v1293 = vmul.f32 %v1282, %v1292
        %v1294 = vmul.f32 %v1285, %v1292
        %v1295 = vsub.f32 %v1278, %v1293
        %v1296 = vsub.f32 %v1279, %v1294
        %v1297 = vmul.f32 %v1295, %v1295
        %v1298 = vmul.f32 %v1296, %v1296
        %v1299 = vsel %vm684, %v1297, 0.0
        %1300 = vadd.xlane.f32.xlu0 %v1299
        %v1301 = vpop.xlane.xlu0 %1300
        %v1302 = vsel %vm684, %v1298, 0.0
        %1303 = vadd.xlane.f32.xlu0 %v1302
        %v1304 = vpop.xlane.xlu0 %1303
        %v1305 = vmul.f32 %v1301, %v1292
        %v1306 = vmul.f32 %v1304, %v1292
        %v1307 = vadd.f32 %v1305, 1e-06
        %v1308 = vadd.f32 %v1306, 1e-06
        %v1309 = vrsqrt.pop %v1307
        %v1310 = vmul.f32 %v1309, %v1307
        %v1311 = vmul.f32 %v1310, %v1309
        %v1312 = vmul.f32 0.5, %v1311
        %v1313 = vsub.f32 1.5, %v1312
        %v1314 = vmul.f32 %v1309, %v1313
        %vm1315 = vweird.f32 %v1307
        %vm1316 = vweird.f32 %v1309
        %vm1317 = vmor %vm1315, %vm1316
        %v1318 = vsel %vm1317, %v1309, %v1314
        %v1319 = vrsqrt.pop %v1308
        %v1320 = vmul.f32 %v1319, %v1308
        %v1321 = vmul.f32 %v1320, %v1319
        %v1322 = vmul.f32 0.5, %v1321
        %v1323 = vsub.f32 1.5, %v1322
        %v1324 = vmul.f32 %v1319, %v1323
        %vm1325 = vweird.f32 %v1308
        %vm1326 = vweird.f32 %v1319
        %vm1327 = vmor %vm1325, %vm1326
        %v1328 = vsel %vm1327, %v1319, %v1324
        %v1329 = vmul.f32 %v1295, %v1318
        %v1330 = vmul.f32 %v1296, %v1328
        %v1332 = vperm.slane %v1276, 0
        %v1334 = vmul.f32 %v1329, %v1332
        %v1335 = vmul.f32 %v1330, %v1332
        %v1337 = vperm.slane %v1277, 0
        %v1339 = vadd.f32 %v1334, %v1337
        %v1340 = vadd.f32 %v1335, %v1337
        %v1341 = vld [vmem:[%s633] sm:$0xf]
        %v1342 = vld [vmem:[%s633 + $0x4] sm:$0xf]
        %v1343 = vld [vmem:[%s633 + $0x8] sm:$0xf]
        %v1344 = vld [vmem:[%s633 + $0xc] sm:$0xf]
        %v1345 = vpack.c.bf16 %v1340, %v1339
        %v1346 = vld [vmem:[%s636] sm:$0x1]
        %v1348 = vperm.slane %v1346, 0
        %v1354 = vunpack.c.l.b16 %v1341
        %v1355 = vunpack.c.l.b16 %v1342
        %v1356 = vunpack.c.l.b16 %v1343
        %v1357 = vunpack.c.l.b16 %v1344
        %v1358 = vpack.c.b16 %v1355, %v1354
        %v1359 = vpack.c.b16 %v1357, %v1356
        %v1363 = vsel %vm684, %v1345, 0
        %1365 = vmatpush.bf16.msra.mxu0 0
        %1366 = vmatpush.bf16.msra.mxu0 0
        %1367 = vmatpush.bf16.msra.mxu0 0
        %1368 = vmatpush.bf16.msra.mxu0 0
        %1369 = vmatpush.bf16.msra.mxu0 0
        %1370 = vmatpush.bf16.msra.mxu0 0
        %1371 = vmatpush.bf16.msra.mxu0 %v1359
        %1372 = vmatpush.bf16.msra.mxu0 %v1358
        %1373 = vmatmul.bf16.gmra.mxu0 %v1363
        %v1374 = vpop.f32.mrf.mxu0
        %v1375 = vadd.f32 %v1348, %v1374
        %v1376 = vpop.f32.mrf.mxu0
        %v1377 = vadd.f32 %v1348, %v1376
        %1378 = vdwg.mxu0
        %v1379 = vmax.f32 %v1375, 0.0
        %v1380 = vmax.f32 %v1377, 0.0
        %v1381 = vld [vmem:[%s641] sm:$0xf]
        %v1382 = vld [vmem:[%s641 + $0x4] sm:$0xf]
        %v1383 = vld [vmem:[%s641 + $0x8] sm:$0xf]
        %v1384 = vld [vmem:[%s641 + $0xc] sm:$0xf]
        %v1385 = vld [vmem:[%s641 + $0x10] sm:$0xf]
        %v1386 = vld [vmem:[%s641 + $0x14] sm:$0xf]
        %v1387 = vld [vmem:[%s641 + $0x18] sm:$0xf]
        %v1388 = vld [vmem:[%s641 + $0x1c] sm:$0xf]
        %v1389 = vpack.c.bf16 %v1380, %v1379
        %v1390 = vld [vmem:[%s644] sm:$0x1]
        %v1392 = vperm.slane %v1390, 0
        %v1402 = vunpack.c.l.b16 %v1381
        %v1403 = vunpack.c.l.b16 %v1382
        %v1404 = vunpack.c.l.b16 %v1383
        %v1405 = vunpack.c.l.b16 %v1384
        %v1406 = vunpack.c.l.b16 %v1385
        %v1407 = vunpack.c.l.b16 %v1386
        %v1408 = vunpack.c.l.b16 %v1387
        %v1409 = vunpack.c.l.b16 %v1388
        %v1410 = vpack.c.b16 %v1403, %v1402
        %v1411 = vpack.c.b16 %v1405, %v1404
        %v1412 = vpack.c.b16 %v1407, %v1406
        %v1413 = vpack.c.b16 %v1409, %v1408
        %vm1418 = vcmask 523264
        %v1420 = vsel %vm1418, %v1389, 0
        %1422 = vmatpush.bf16.msra.mxu0 0
        %1423 = vmatpush.bf16.msra.mxu0 0
        %1424 = vmatpush.bf16.msra.mxu0 0
        %1425 = vmatpush.bf16.msra.mxu0 0
        %1426 = vmatpush.bf16.msra.mxu0 %v1413
        %1427 = vmatpush.bf16.msra.mxu0 %v1412
        %1428 = vmatpush.bf16.msra.mxu0 %v1411
        %1429 = vmatpush.bf16.msra.mxu0 %v1410
        %1430 = vmatmul.bf16.gmra.mxu0 %v1420
        %v1431 = vpop.f32.mrf.mxu0
        %v1432 = vadd.f32 %v1392, %v1431
        %v1433 = vpop.f32.mrf.mxu0
        %v1434 = vadd.f32 %v1392, %v1433
        %1435 = vdwg.mxu0
        %v1436 = vadd.f32 %v1339, %v1432
        %v1437 = vadd.f32 %v1340, %v1434
        %v1438 = vsel %vm684, %v1436, 0.0
        %1439 = vadd.xlane.f32.xlu0 %v1438
        %v1440 = vpop.xlane.xlu0 %1439
        %v1441 = vsel %vm684, %v1437, 0.0
        %1442 = vadd.xlane.f32.xlu0 %v1441
        %v1443 = vpop.xlane.xlu0 %1442
        %v1444 = vmul.f32 %v1440, %v1292
        %v1445 = vmul.f32 %v1443, %v1292
        %v1446 = vsub.f32 %v1436, %v1444
        %v1447 = vsub.f32 %v1437, %v1445
        %v1448 = vmul.f32 %v1446, %v1446
        %v1449 = vmul.f32 %v1447, %v1447
        %v1450 = vsel %vm684, %v1448, 0.0
        %1451 = vadd.xlane.f32.xlu0 %v1450
        %v1452 = vpop.xlane.xlu0 %1451
        %v1453 = vsel %vm684, %v1449, 0.0
        %1454 = vadd.xlane.f32.xlu0 %v1453
        %v1455 = vpop.xlane.xlu0 %1454
        %v1456 = vmul.f32 %v1452, %v1292
        %v1457 = vmul.f32 %v1455, %v1292
        %v1458 = vadd.f32 %v1456, 1e-06
        %v1459 = vadd.f32 %v1457, 1e-06
        %v1460 = vrsqrt.pop %v1458
        %v1461 = vmul.f32 %v1460, %v1458
        %v1462 = vmul.f32 %v1461, %v1460
        %v1463 = vmul.f32 0.5, %v1462
        %v1464 = vsub.f32 1.5, %v1463
        %v1465 = vmul.f32 %v1460, %v1464
        %vm1466 = vweird.f32 %v1458
        %vm1467 = vweird.f32 %v1460
        %vm1468 = vmor %vm1466, %vm1467
        %v1469 = vsel %vm1468, %v1460, %v1465
        %v1470 = vrsqrt.pop %v1459
        %v1471 = vmul.f32 %v1470, %v1459
        %v1472 = vmul.f32 %v1471, %v1470
        %v1473 = vmul.f32 0.5, %v1472
        %v1474 = vsub.f32 1.5, %v1473
        %v1475 = vmul.f32 %v1470, %v1474
        %vm1476 = vweird.f32 %v1459
        %vm1477 = vweird.f32 %v1470
        %vm1478 = vmor %vm1476, %vm1477
        %v1479 = vsel %vm1478, %v1470, %v1475
        %v1480 = vmul.f32 %v1446, %v1469
        %v1481 = vmul.f32 %v1447, %v1479
        %v1482 = vmul.f32 %v1480, %v1332
        %v1483 = vmul.f32 %v1481, %v1332
        %v1484 = vadd.f32 %v1482, %v1337
        %v1485 = vadd.f32 %v1483, %v1337
        %1486 = vst.msk [vmem:[#allocation2] sm:$0xff] %vm684, %v1484
        %1487 = vst.msk [vmem:[#allocation2 + $0x8] sm:$0xff] %vm684, %v1485
        %p1488 = scmp.eq.s32.totalorder %s31, 1
        // Predicated region
        $region89: #{tpu_custom_call.1} parent=67 // pred_check
          %p1489 = pneg %p1488
        $region90: #{tpu_custom_call.1} parent=67 // pred_check_branch
          %1491 = sbr.rel (%p1489) target = $region92
        $region91: #{tpu_custom_call.1} parent=67 // pred_region
          %1492 = vst.msk [vmem:[#allocation10] sm:$0xff] %vm684, %v1484
          %1493 = vst.msk [vmem:[#allocation10 + $0x8] sm:$0xff] %vm684, %v1485
        $region92: #{tpu_custom_call.1} parent=67 // pred_fallthru
          _
        // Predicated region
        $region93: #{tpu_custom_call.1} parent=67 // pred_check
          %p1494 = pneg %p368
        $region94: #{tpu_custom_call.1} parent=67 // pred_check_branch
          %1496 = sbr.rel (%p1494) target = $region96
        $region95: #{tpu_custom_call.1} parent=67 // pred_region
          %s1497 = smul.u32 2, %s30
          %1499 = vsyncadd [#allocation5], 0
          %s1500 = smul.addr %s1497, 8
          %s1501 = scalar_lea.hbm %s12, %s1500
          %s1502 = sshll.u32 [#allocation10], 4
          %s1503 = int_to_ptr.vmem [resolvable:$true] %s1502
          %s1504 = sshll.u32 %s1501, 4
          %s1505 = int_to_ptr.hbm [resolvable:$true] %s1504
          %1510 = dma.vmem_to_hbm [thread:$0]  %s1503, 256, %s1505, [#allocation5], 128, 128, 8
        $region96: #{tpu_custom_call.1} parent=67 // pred_fallthru
          _
        // Predicated region
        $region97: #{tpu_custom_call.1} parent=67 // pred_check
          %p1511 = pneg %p368
        $region98: #{tpu_custom_call.1} parent=67 // pred_check_branch
          %1513 = sbr.rel (%p1511) target = $region100
        $region99: #{tpu_custom_call.1} parent=67 // pred_region
          %1515 = dma.done [#allocation5], 256
        $region100: #{tpu_custom_call.1} parent=67 // pred_fallthru
          _
      $region68: #{tpu_custom_call.1} parent=5 // pred_fallthru
        _
      %p1516 = scmp.le.s32.totalorder 2, %s21
      // Predicated region
      $region101: #{tpu_custom_call.1} parent=5 // pred_check
        %p1517 = pneg %p1516
      $region102: #{tpu_custom_call.1} parent=5 // pred_check_branch
        %1519 = sbr.rel (%p1517) target = $region104
      $region103: #{tpu_custom_call.1} parent=5 // pred_region
        %s1520 = ssub.s32 %s21, 2
      $region104: #{tpu_custom_call.1} parent=5 // pred_fallthru
        _
    $region6: #{tpu_custom_call.1} parent=1 // loop_footer
      %s25 = sadd.s32 1, %s21
    $region7: #{tpu_custom_call.1} parent=1 // loop_footer_branch
      %20 = sbr.rel target = $region3
    $region8: #{tpu_custom_call.1} parent=1 // loop_exit
      _
    %1521 = vsyncpa [#allocation4], 1
    %s1522 = scalar_lea.sflag [#allocation4], 1
    %1523 = vsyncpa %s1522, 1
    %1524 = vsyncpa [#allocation7], 1
    %1525 = vsyncpa [#allocation5], 1
    %s1526 = scalar_lea.sflag [#allocation5], 1
    %1527 = vsyncpa %s1526, 1

</llo_original>
